<compile_context>
chip_gen: v5e
topology: v5e:2x2
jax: 0.10.0
libtpu: 0.0.40
codegen_flags: <defaults>
</compile_context>

<pallas_src>
import functools

import jax
import jax.numpy as jnp
from jax import lax
from jax.experimental import pallas as pl
from jax.experimental.pallas import tpu as pltpu


# ---------------------------------------------------------------------------
# Pallas kernel: one grid step == one (batch tile, time chunk).
# The hidden state lives in a VMEM scratch buffer across time chunks.
# ---------------------------------------------------------------------------
def _gru_chunk_kernel(x_ref, m_ref, h0_ref, wi_ref, wh_ref, bx_ref, bhn_ref,
                      g_ref, b_ref,                      # inputs
                      y_ref, hout_ref,                   # outputs
                      h_scr, gxr_scr, gxz_scr, gxn_scr,  # VMEM scratch
                      *, t_chunk, seq_len, apply_ln, needs_guard):
    c = pl.program_id(1)                    # time-chunk index (serial axis)
    bsz, hid = h_scr.shape
    din = x_ref.shape[-1]

    @pl.when(c == 0)
    def _():
        h_scr[...] = h0_ref[...]

    # ---- hoisted input projection for the whole chunk (big-M MXU matmuls) --
    x2d = x_ref[...].reshape(t_chunk * bsz, din)
    gxr_scr[...] = (jnp.dot(x2d, wi_ref[0], preferred_element_type=jnp.float32)
                    + bx_ref[0]).reshape(t_chunk, bsz, hid)
    gxz_scr[...] = (jnp.dot(x2d, wi_ref[1], preferred_element_type=jnp.float32)
                    + bx_ref[1]).reshape(t_chunk, bsz, hid)
    gxn_scr[...] = (jnp.dot(x2d, wi_ref[2], preferred_element_type=jnp.float32)
                    + bx_ref[2]).reshape(t_chunk, bsz, hid)

    # Hoist loop-invariant loads out of the recurrence.
    whr = wh_ref[0]
    whz = wh_ref[1]
    whn = wh_ref[2]
    bhn = bhn_ref[...]
    gamma = g_ref[...]
    beta = b_ref[...]

    def step(t, h):
        hm = h * m_ref[t]                   # per-step mask reset (== segments)
        r = jax.nn.sigmoid(
            gxr_scr[t] + jnp.dot(hm, whr, preferred_element_type=jnp.float32))
        z = jax.nn.sigmoid(
            gxz_scr[t] + jnp.dot(hm, whz, preferred_element_type=jnp.float32))
        n = jnp.tanh(
            gxn_scr[t]
            + r * (jnp.dot(hm, whn, preferred_element_type=jnp.float32) + bhn))
        h_new = (1.0 - z) * n + z * hm

        if apply_ln:                        # LayerNorm(hidden_dim), eps = 1e-5
            mu = jnp.mean(h_new, axis=-1, keepdims=True)
            var = jnp.mean((h_new - mu) ** 2, axis=-1, keepdims=True)
            y = (h_new - mu) * lax.rsqrt(var + 1e-5) * gamma + beta
        else:
            y = h_new
        y_ref[t] = y

        if needs_guard:                     # last chunk may contain padding
            h_new = jnp.where(c * t_chunk + t < seq_len, h_new, h)
        return h_new

    h_final = lax.fori_loop(0, t_chunk, step, h_scr[...], unroll=True)
    h_scr[...] = h_final

    @pl.when(c == pl.num_programs(1) - 1)   # write final hidden only once
    def _():
        hout_ref[...] = h_final


def _pick_batch_block(batch):
    """Split the batch across TensorCores (v7x) when it is large enough."""
    if batch >= 16 and batch % 16 == 0:
        return batch // 2
    return batch


def gru_layer_pallas(x_seq, m_seq, h0, wi, wh, bx, bhn, gamma, beta, *,
                     apply_ln, t_chunk, seq_len):
    """One GRU layer over a (T_pad, B, D) sequence with per-step mask resets."""
    t_pad, batch, din = x_seq.shape
    hid = h0.shape[-1]
    n_chunks = t_pad // t_chunk
    b_block = _pick_batch_block(batch)
    n_b = batch // b_block
    needs_guard = (seq_len != t_pad)

    kernel = functools.partial(_gru_chunk_kernel, t_chunk=t_chunk,
                               seq_len=seq_len, apply_ln=apply_ln,
                               needs_guard=needs_guard)

    y, h_final = pl.pallas_call(
        kernel,
        out_shape=(jax.ShapeDtypeStruct((t_pad, batch, hid), jnp.float32),
                   jax.ShapeDtypeStruct((batch, hid), jnp.float32)),
        grid_spec=pltpu.PrefetchScalarGridSpec(
            num_scalar_prefetch=0,
            grid=(n_b, n_chunks),
            in_specs=[
                pl.BlockSpec((t_chunk, b_block, din),
                             lambda bi, c: (c, bi, 0)),          # x chunk
                pl.BlockSpec((t_chunk, b_block, 1),
                             lambda bi, c: (c, bi, 0)),          # mask chunk
                pl.BlockSpec((b_block, hid), lambda bi, c: (bi, 0)),   # h0
                pl.BlockSpec((3, din, hid), lambda bi, c: (0, 0, 0)),  # W_i
                pl.BlockSpec((3, hid, hid), lambda bi, c: (0, 0, 0)),  # W_h
                pl.BlockSpec((3, 1, hid), lambda bi, c: (0, 0, 0)),    # biases
                pl.BlockSpec((1, hid), lambda bi, c: (0, 0)),          # b_hn
                pl.BlockSpec((1, hid), lambda bi, c: (0, 0)),          # gamma
                pl.BlockSpec((1, hid), lambda bi, c: (0, 0)),          # beta
            ],
            out_specs=[
                pl.BlockSpec((t_chunk, b_block, hid),
                             lambda bi, c: (c, bi, 0)),          # y
                pl.BlockSpec((b_block, hid), lambda bi, c: (bi, 0)),   # h_final
            ],
            scratch_shapes=[
                pltpu.VMEM((b_block, hid), jnp.float32),         # h carry
                pltpu.VMEM((t_chunk, b_block, hid), jnp.float32),  # gx_r
                pltpu.VMEM((t_chunk, b_block, hid), jnp.float32),  # gx_z
                pltpu.VMEM((t_chunk, b_block, hid), jnp.float32),  # gx_n
            ],
        ),
        compiler_params=pltpu.CompilerParams(
            dimension_semantics=("parallel", "arbitrary")),
    )(x_seq, m_seq, h0, wi, wh, bx, bhn, gamma, beta)
    return y, h_final


# ---------------------------------------------------------------------------
# Parameter init (deterministic, mirrors the module's __init__)
# ---------------------------------------------------------------------------
def orthogonal_init(key, rows, cols, gain):
    a = jax.random.normal(key, (max(rows, cols), min(rows, cols)), jnp.float32)
    q, r = jnp.linalg.qr(a)
    q = q * jnp.sign(jnp.diagonal(r))
    if rows < cols:
        q = q.T
    return (gain * q[:rows, :cols]).astype(jnp.float32)


class GRUModulePallas:
    """JAX/Pallas equivalent of the PyTorch GRUModule forward pass."""

    def __init__(self, input_dim, hidden_dim, num_layers=1, key=None,
                 t_chunk=8):
        self.input_dim = input_dim
        self.hidden_dim = hidden_dim
        self.num_layers = num_layers
        self.t_chunk = t_chunk
        if key is None:
            key = jax.random.PRNGKey(0)
        H = hidden_dim

        # PyTorch-layout params (kept for the pure-JAX reference).
        self.wih, self.whh, self.bih, self.bhh = [], [], [], []
        # Kernel-layout params: gate-major, pre-transposed, biases pre-folded.
        self.wi_k, self.wh_k, self.bx_k, self.bhn_k = [], [], [], []
        for l in range(num_layers):
            in_dim = input_dim if l == 0 else hidden_dim
            key, k1, k2 = jax.random.split(key, 3)
            wih = orthogonal_init(k1, 3 * H, in_dim, 1.4)   # (3H, in_dim)
            whh = orthogonal_init(k2, 3 * H, H, 1.4)        # (3H, H)
            bih = jnp.zeros((1, 3 * H), jnp.float32)
            bhh = jnp.zeros((1, 3 * H), jnp.float32)
            self.wih.append(wih)
            self.whh.append(whh)
            self.bih.append(bih)
            self.bhh.append(bhh)

            # gate order [r, z, n]
            wi = jnp.stack([wih[0:H].T, wih[H:2 * H].T, wih[2 * H:3 * H].T])
            wh = jnp.stack([whh[0:H].T, whh[H:2 * H].T, whh[2 * H:3 * H].T])
            bih3 = bih.reshape(3, 1, H)
            bhh3 = bhh.reshape(3, 1, H)
            bx = jnp.concatenate([bih3[:2] + bhh3[:2], bih3[2:3]], axis=0)
            self.wi_k.append(wi)                    # (3, in_dim, H)
            self.wh_k.append(wh)                    # (3, H, H)
            self.bx_k.append(bx)                    # (3, 1, H)
            self.bhn_k.append(bhh3[2])              # (1, H)

        self.ln_gamma = jnp.ones((1, hidden_dim), jnp.float32)
        self.ln_beta = jnp.zeros((1, hidden_dim), jnp.float32)

    def __call__(self, x, rnn_states, masks):
        """
        x:          (B_x, input_dim)  (B_x == B for single step, T*B otherwise)
        rnn_states: (B, num_layers, hidden_dim)
        masks:      (B_x, 1)
        returns (y, new_rnn_states): y (B_x, hidden_dim),
        new_rnn_states (B, num_layers, hidden_dim).
        """
        B = rnn_states.shape[0]
        T = x.shape[0] // B
        x_seq = x.reshape(T, B, self.input_dim).astype(jnp.float32)
        m_seq = masks.reshape(T, B, 1).astype(jnp.float32)

        t_chunk = min(self.t_chunk, T)
        n_chunks = -(-T // t_chunk)
        t_pad = n_chunks * t_chunk
        if t_pad != T:
            x_seq = jnp.concatenate(
                [x_seq, jnp.zeros((t_pad - T, B, self.input_dim), jnp.float32)],
                axis=0)
            m_seq = jnp.concatenate(
                [m_seq, jnp.ones((t_pad - T, B, 1), jnp.float32)], axis=0)

        layer_in = x_seq
        new_states = []
        for l in range(self.num_layers):
            h0 = rnn_states[:, l, :].astype(jnp.float32)
            y, h_final = gru_layer_pallas(
                layer_in, m_seq, h0, self.wi_k[l], self.wh_k[l], self.bx_k[l],
                self.bhn_k[l], self.ln_gamma, self.ln_beta,
                apply_ln=(l == self.num_layers - 1),
                t_chunk=t_chunk, seq_len=T)
            new_states.append(h_final)
            layer_in = y
        out = layer_in[:T].reshape(T * B, self.hidden_dim)
        return out, jnp.stack(new_states, axis=1)


# ---------------------------------------------------------------------------
# Pure-JAX reference (lax.scan) for verification
# ---------------------------------------------------------------------------
def reference_forward(mod, x, rnn_states, masks):
    B = rnn_states.shape[0]
    T = x.shape[0] // B
    H = mod.hidden_dim
    xs = x.reshape(T, B, mod.input_dim).astype(jnp.float32)
    ms = masks.reshape(T, B, 1).astype(jnp.float32)
    layer_in = xs
    new_states = []
    for l in range(mod.num_layers):
        wih, whh = mod.wih[l], mod.whh[l]
        bih, bhh = mod.bih[l], mod.bhh[l]

        def step(h, inp):
            x_t, m_t = inp
            h = h * m_t
            gx = x_t @ wih.T + bih
            gh = h @ whh.T + bhh
            r = jax.nn.sigmoid(gx[:, :H] + gh[:, :H])
            z = jax.nn.sigmoid(gx[:, H:2 * H] + gh[:, H:2 * H])
            n = jnp.tanh(gx[:, 2 * H:] + r * gh[:, 2 * H:])
            h_new = (1.0 - z) * n + z * h
            return h_new, h_new

        h_final, ys = lax.scan(step, rnn_states[:, l, :].astype(jnp.float32),
                               (layer_in, ms))
        new_states.append(h_final)
        layer_in = ys
    y = layer_in
    mu = y.mean(-1, keepdims=True)
    var = ((y - mu) ** 2).mean(-1, keepdims=True)
    y = (y - mu) / jnp.sqrt(var + 1e-5) * mod.ln_gamma + mod.ln_beta
    return y.reshape(T * B, H), jnp.stack(new_states, axis=1)


if __name__ == "__main__":
    input_dim, hidden_dim, num_layers = 32, 32, 2
    B, T = 4, 8

    key = jax.random.PRNGKey(0)
    kp, kx, kh, kx2 = jax.random.split(key, 4)

    mod = GRUModulePallas(input_dim, hidden_dim, num_layers, key=kp)

    # multi-step inputs (T*B, ...) with a couple of episode resets (mask == 0)
    x = jax.random.normal(kx, (T * B, input_dim), jnp.float32)
    rnn_states = jax.random.normal(kh, (B, num_layers, hidden_dim), jnp.float32)
    masks = jnp.ones((T * B, 1), jnp.float32)
    masks = masks.at[3 * B + 1, 0].set(0.0).at[5 * B + 2, 0].set(0.0)

    y, h_out = mod(x, rnn_states, masks)
    jax.block_until_ready((y, h_out))
    y_ref, h_ref = reference_forward(mod, x, rnn_states, masks)
    assert y.shape == (T * B, hidden_dim) and h_out.shape == rnn_states.shape
    assert jnp.allclose(y, y_ref, atol=1e-4, rtol=1e-4)
    assert jnp.allclose(h_out, h_ref, atol=1e-4, rtol=1e-4)

    # ragged sequence (T not a multiple of the time chunk -> multi-chunk grid
    # plus in-kernel padding guard)
    T2 = 11
    x2 = jax.random.normal(kx2, (T2 * B, input_dim), jnp.float32)
    masks2 = jnp.ones((T2 * B, 1), jnp.float32)
    masks2 = masks2.at[2 * B + 0, 0].set(0.0).at[9 * B + 3, 0].set(0.0)
    y2, h2 = mod(x2, rnn_states, masks2)
    jax.block_until_ready((y2, h2))
    y2_ref, h2_ref = reference_forward(mod, x2, rnn_states, masks2)
    assert jnp.allclose(y2, y2_ref, atol=1e-4, rtol=1e-4)
    assert jnp.allclose(h2, h2_ref, atol=1e-4, rtol=1e-4)

    # single-step path (B_x == B)
    y1, h1 = mod(x[:B], rnn_states, masks[:B])
    jax.block_until_ready((y1, h1))
    y1_ref, h1_ref = reference_forward(mod, x[:B], rnn_states, masks[:B])
    assert jnp.allclose(y1, y1_ref, atol=1e-4, rtol=1e-4)
    assert jnp.allclose(h1, h1_ref, atol=1e-4, rtol=1e-4)

    # TODO(synk): host-side `has_zeros` segmentation is replaced by the exactly
    # equivalent per-step mask multiply (valid for {0,1} masks).
    print("KERNEL_OK")
</pallas_src>

<mosaic_0001>
module attributes {stable_mosaic.version = 11 : i64} {
  func.func @_gru_chunk_kernel(%arg0: i32, %arg1: i32, %arg2: memref<8x4x32xf32, #tpu.memory_space<vmem>>, %arg3: memref<8x4x1xf32, #tpu.memory_space<vmem>>, %arg4: memref<4x32xf32, #tpu.memory_space<vmem>>, %arg5: memref<3x32x32xf32, #tpu.memory_space<vmem>>, %arg6: memref<3x32x32xf32, #tpu.memory_space<vmem>>, %arg7: memref<3x1x32xf32, #tpu.memory_space<vmem>>, %arg8: memref<1x32xf32, #tpu.memory_space<vmem>>, %arg9: memref<1x32xf32, #tpu.memory_space<vmem>>, %arg10: memref<1x32xf32, #tpu.memory_space<vmem>>, %arg11: memref<8x4x32xf32, #tpu.memory_space<vmem>>, %arg12: memref<4x32xf32, #tpu.memory_space<vmem>>, %arg13: memref<4x32xf32, #tpu.memory_space<vmem>>, %arg14: memref<8x4x32xf32, #tpu.memory_space<vmem>>, %arg15: memref<8x4x32xf32, #tpu.memory_space<vmem>>, %arg16: memref<8x4x32xf32, #tpu.memory_space<vmem>>) attributes {dimension_semantics = [#tpu.dimension_semantics<parallel>, #tpu.dimension_semantics<arbitrary>], iteration_bounds = array<i64: 1, 1>, scalar_prefetch = 0 : i64, scratch_operands = 4 : i64, tpu.core_type = #tpu.core_type<tc>, window_params = [{transform_indices = @transform_0, window_bounds = array<i64: 8, 4, 32>}, {transform_indices = @transform_1, window_bounds = array<i64: 8, 4, 1>}, {transform_indices = @transform_2, window_bounds = array<i64: 4, 32>}, {pipeline_mode = #tpu.pipeline_mode<synchronous>, transform_indices = @transform_3, window_bounds = array<i64: 3, 32, 32>}, {pipeline_mode = #tpu.pipeline_mode<synchronous>, transform_indices = @transform_4, window_bounds = array<i64: 3, 32, 32>}, {pipeline_mode = #tpu.pipeline_mode<synchronous>, transform_indices = @transform_5, window_bounds = array<i64: 3, 1, 32>}, {pipeline_mode = #tpu.pipeline_mode<synchronous>, transform_indices = @transform_6, window_bounds = array<i64: 1, 32>}, {pipeline_mode = #tpu.pipeline_mode<synchronous>, transform_indices = @transform_7, window_bounds = array<i64: 1, 32>}, {pipeline_mode = #tpu.pipeline_mode<synchronous>, transform_indices = @transform_8, window_bounds = array<i64: 1, 32>}, {transform_indices = @transform_9, window_bounds = array<i64: 8, 4, 32>}, {transform_indices = @transform_10, window_bounds = array<i64: 4, 32>}]} {
    %c0_i32 = arith.constant 0 : i32
    %0 = arith.cmpi eq, %arg1, %c0_i32 : i32
    %1 = arith.extui %0 : i1 to i32
    %c0_i32_0 = arith.constant 0 : i32
    %2 = arith.cmpi ne, %1, %c0_i32_0 : i32
    scf.if %2 {
      %c0_176 = arith.constant 0 : index
      %c0_177 = arith.constant 0 : index
      %388 = vector.load %arg4[%c0_176, %c0_177] : memref<4x32xf32, #tpu.memory_space<vmem>>, vector<4x32xf32>
      %c0_178 = arith.constant 0 : index
      %c0_179 = arith.constant 0 : index
      %389 = vector.load %arg13[%c0_178, %c0_179] : memref<4x32xf32, #tpu.memory_space<vmem>>, vector<4x32xf32>
      tpu.vector_store %arg13[%c0_178, %c0_179], %388 {strides = array<i32>} : memref<4x32xf32, #tpu.memory_space<vmem>>, vector<4x32xf32>,
    } else {
    }
    %c0 = arith.constant 0 : index
    %c0_1 = arith.constant 0 : index
    %c0_2 = arith.constant 0 : index
    %3 = vector.load %arg2[%c0, %c0_1, %c0_2] : memref<8x4x32xf32, #tpu.memory_space<vmem>>, vector<8x4x32xf32>
    %4 = vector.shape_cast %3 : vector<8x4x32xf32> to vector<32x32xf32>
    %c0_3 = arith.constant 0 : index
    %c0_4 = arith.constant 0 : index
    %c0_5 = arith.constant 0 : index
    %5 = vector.load %arg5[%c0_3, %c0_4, %c0_5] : memref<3x32x32xf32, #tpu.memory_space<vmem>>, vector<1x32x32xf32>
    %6 = vector.shape_cast %5 : vector<1x32x32xf32> to vector<32x32xf32>
    %cst = arith.constant dense<0.000000e+00> : vector<32x32xf32>
    %7 = tpu.matmul %4, %6, %cst {dimension_numbers = #tpu.dot_dimension_numbers<[1], [0], [0], [1], [0, 0, 1, 1], [], []>} : vector<32x32xf32>, vector<32x32xf32>, vector<32x32xf32> -> vector<32x32xf32>
    %c0_6 = arith.constant 0 : index
    %c0_7 = arith.constant 0 : index
    %c0_8 = arith.constant 0 : index
    %8 = vector.load %arg7[%c0_6, %c0_7, %c0_8] : memref<3x1x32xf32, #tpu.memory_space<vmem>>, vector<1x1x32xf32>
    %9 = vector.shape_cast %8 : vector<1x1x32xf32> to vector<1x32xf32>
    %10 = vector.broadcast %9 : vector<1x32xf32> to vector<32x32xf32>
    %11 = arith.addf %7, %10 : vector<32x32xf32>
    %12 = vector.shape_cast %11 : vector<32x32xf32> to vector<8x4x32xf32>
    %c0_9 = arith.constant 0 : index
    %c0_10 = arith.constant 0 : index
    %c0_11 = arith.constant 0 : index
    %13 = vector.load %arg14[%c0_9, %c0_10, %c0_11] : memref<8x4x32xf32, #tpu.memory_space<vmem>>, vector<8x4x32xf32>
    tpu.vector_store %arg14[%c0_9, %c0_10, %c0_11], %12 {strides = array<i32>} : memref<8x4x32xf32, #tpu.memory_space<vmem>>, vector<8x4x32xf32>,
    %c1 = arith.constant 1 : index
    %c0_12 = arith.constant 0 : index
    %c0_13 = arith.constant 0 : index
    %14 = vector.load %arg5[%c1, %c0_12, %c0_13] : memref<3x32x32xf32, #tpu.memory_space<vmem>>, vector<1x32x32xf32>
    %15 = vector.shape_cast %14 : vector<1x32x32xf32> to vector<32x32xf32>
    %cst_14 = arith.constant dense<0.000000e+00> : vector<32x32xf32>
    %16 = tpu.matmul %4, %15, %cst_14 {dimension_numbers = #tpu.dot_dimension_numbers<[1], [0], [0], [1], [0, 0, 1, 1], [], []>} : vector<32x32xf32>, vector<32x32xf32>, vector<32x32xf32> -> vector<32x32xf32>
    %c1_15 = arith.constant 1 : index
    %c0_16 = arith.constant 0 : index
    %c0_17 = arith.constant 0 : index
    %17 = vector.load %arg7[%c1_15, %c0_16, %c0_17] : memref<3x1x32xf32, #tpu.memory_space<vmem>>, vector<1x1x32xf32>
    %18 = vector.shape_cast %17 : vector<1x1x32xf32> to vector<1x32xf32>
    %19 = vector.broadcast %18 : vector<1x32xf32> to vector<32x32xf32>
    %20 = arith.addf %16, %19 : vector<32x32xf32>
    %21 = vector.shape_cast %20 : vector<32x32xf32> to vector<8x4x32xf32>
    %c0_18 = arith.constant 0 : index
    %c0_19 = arith.constant 0 : index
    %c0_20 = arith.constant 0 : index
    %22 = vector.load %arg15[%c0_18, %c0_19, %c0_20] : memref<8x4x32xf32, #tpu.memory_space<vmem>>, vector<8x4x32xf32>
    tpu.vector_store %arg15[%c0_18, %c0_19, %c0_20], %21 {strides = array<i32>} : memref<8x4x32xf32, #tpu.memory_space<vmem>>, vector<8x4x32xf32>,
    %c2 = arith.constant 2 : index
    %c0_21 = arith.constant 0 : index
    %c0_22 = arith.constant 0 : index
    %23 = vector.load %arg5[%c2, %c0_21, %c0_22] : memref<3x32x32xf32, #tpu.memory_space<vmem>>, vector<1x32x32xf32>
    %24 = vector.shape_cast %23 : vector<1x32x32xf32> to vector<32x32xf32>
    %cst_23 = arith.constant dense<0.000000e+00> : vector<32x32xf32>
    %25 = tpu.matmul %4, %24, %cst_23 {dimension_numbers = #tpu.dot_dimension_numbers<[1], [0], [0], [1], [0, 0, 1, 1], [], []>} : vector<32x32xf32>, vector<32x32xf32>, vector<32x32xf32> -> vector<32x32xf32>
    %c2_24 = arith.constant 2 : index
    %c0_25 = arith.constant 0 : index
    %c0_26 = arith.constant 0 : index
    %26 = vector.load %arg7[%c2_24, %c0_25, %c0_26] : memref<3x1x32xf32, #tpu.memory_space<vmem>>, vector<1x1x32xf32>
    %27 = vector.shape_cast %26 : vector<1x1x32xf32> to vector<1x32xf32>
    %28 = vector.broadcast %27 : vector<1x32xf32> to vector<32x32xf32>
    %29 = arith.addf %25, %28 : vector<32x32xf32>
    %30 = vector.shape_cast %29 : vector<32x32xf32> to vector<8x4x32xf32>
    %c0_27 = arith.constant 0 : index
    %c0_28 = arith.constant 0 : index
    %c0_29 = arith.constant 0 : index
    %31 = vector.load %arg16[%c0_27, %c0_28, %c0_29] : memref<8x4x32xf32, #tpu.memory_space<vmem>>, vector<8x4x32xf32>
    tpu.vector_store %arg16[%c0_27, %c0_28, %c0_29], %30 {strides = array<i32>} : memref<8x4x32xf32, #tpu.memory_space<vmem>>, vector<8x4x32xf32>,
    %c0_30 = arith.constant 0 : index
    %c0_31 = arith.constant 0 : index
    %c0_32 = arith.constant 0 : index
    %32 = vector.load %arg6[%c0_30, %c0_31, %c0_32] : memref<3x32x32xf32, #tpu.memory_space<vmem>>, vector<1x32x32xf32>
    %33 = vector.shape_cast %32 : vector<1x32x32xf32> to vector<32x32xf32>
    %c1_33 = arith.constant 1 : index
    %c0_34 = arith.constant 0 : index
    %c0_35 = arith.constant 0 : index
    %34 = vector.load %arg6[%c1_33, %c0_34, %c0_35] : memref<3x32x32xf32, #tpu.memory_space<vmem>>, vector<1x32x32xf32>
    %35 = vector.shape_cast %34 : vector<1x32x32xf32> to vector<32x32xf32>
    %c2_36 = arith.constant 2 : index
    %c0_37 = arith.constant 0 : index
    %c0_38 = arith.constant 0 : index
    %36 = vector.load %arg6[%c2_36, %c0_37, %c0_38] : memref<3x32x32xf32, #tpu.memory_space<vmem>>, vector<1x32x32xf32>
    %37 = vector.shape_cast %36 : vector<1x32x32xf32> to vector<32x32xf32>
    %c0_39 = arith.constant 0 : index
    %c0_40 = arith.constant 0 : index
    %38 = vector.load %arg8[%c0_39, %c0_40] : memref<1x32xf32, #tpu.memory_space<vmem>>, vector<1x32xf32>
    %c0_41 = arith.constant 0 : index
    %c0_42 = arith.constant 0 : index
    %39 = vector.load %arg13[%c0_41, %c0_42] : memref<4x32xf32, #tpu.memory_space<vmem>>, vector<4x32xf32>
    %c0_i32_43 = arith.constant 0 : i32
    %40 = arith.index_cast %c0_i32_43 : i32 to index
    %c0_44 = arith.constant 0 : index
    %c0_45 = arith.constant 0 : index
    %41 = vector.load %arg3[%40, %c0_44, %c0_45] : memref<8x4x1xf32, #tpu.memory_space<vmem>>, vector<1x4x1xf32>
    %42 = vector.shape_cast %41 : vector<1x4x1xf32> to vector<4x1xf32>
    %43 = vector.broadcast %42 : vector<4x1xf32> to vector<4x32xf32>
    %44 = arith.mulf %39, %43 : vector<4x32xf32>
    %45 = arith.index_cast %c0_i32_43 : i32 to index
    %c0_46 = arith.constant 0 : index
    %c0_47 = arith.constant 0 : index
    %46 = vector.load %arg14[%45, %c0_46, %c0_47] : memref<8x4x32xf32, #tpu.memory_space<vmem>>, vector<1x4x32xf32>
    %47 = vector.shape_cast %46 : vector<1x4x32xf32> to vector<4x32xf32>
    %cst_48 = arith.constant dense<0.000000e+00> : vector<4x32xf32>
    %48 = tpu.matmul %44, %33, %cst_48 {dimension_numbers = #tpu.dot_dimension_numbers<[1], [0], [0], [1], [0, 0, 1, 1], [], []>} : vector<4x32xf32>, vector<32x32xf32>, vector<4x32xf32> -> vector<4x32xf32>
    %49 = arith.addf %47, %48 : vector<4x32xf32>
    %50 = arith.negf %49 : vector<4x32xf32>
    %51 = math.exp %50 : vector<4x32xf32>
    %cst_49 = arith.constant 1.000000e+00 : f32
    %52 = vector.broadcast %cst_49 : f32 to vector<4x32xf32>
    %53 = arith.addf %52, %51 : vector<4x32xf32>
    %54 = arith.divf %52, %53 : vector<4x32xf32>
    %55 = arith.index_cast %c0_i32_43 : i32 to index
    %c0_50 = arith.constant 0 : index
    %c0_51 = arith.constant 0 : index
    %56 = vector.load %arg15[%55, %c0_50, %c0_51] : memref<8x4x32xf32, #tpu.memory_space<vmem>>, vector<1x4x32xf32>
    %57 = vector.shape_cast %56 : vector<1x4x32xf32> to vector<4x32xf32>
    %cst_52 = arith.constant dense<0.000000e+00> : vector<4x32xf32>
    %58 = tpu.matmul %44, %35, %cst_52 {dimension_numbers = #tpu.dot_dimension_numbers<[1], [0], [0], [1], [0, 0, 1, 1], [], []>} : vector<4x32xf32>, vector<32x32xf32>, vector<4x32xf32> -> vector<4x32xf32>
    %59 = arith.addf %57, %58 : vector<4x32xf32>
    %60 = arith.negf %59 : vector<4x32xf32>
    %61 = math.exp %60 : vector<4x32xf32>
    %cst_53 = arith.constant 1.000000e+00 : f32
    %62 = vector.broadcast %cst_53 : f32 to vector<4x32xf32>
    %63 = arith.addf %62, %61 : vector<4x32xf32>
    %64 = arith.divf %62, %63 : vector<4x32xf32>
    %65 = arith.index_cast %c0_i32_43 : i32 to index
    %c0_54 = arith.constant 0 : index
    %c0_55 = arith.constant 0 : index
    %66 = vector.load %arg16[%65, %c0_54, %c0_55] : memref<8x4x32xf32, #tpu.memory_space<vmem>>, vector<1x4x32xf32>
    %67 = vector.shape_cast %66 : vector<1x4x32xf32> to vector<4x32xf32>
    %cst_56 = arith.constant dense<0.000000e+00> : vector<4x32xf32>
    %68 = tpu.matmul %44, %37, %cst_56 {dimension_numbers = #tpu.dot_dimension_numbers<[1], [0], [0], [1], [0, 0, 1, 1], [], []>} : vector<4x32xf32>, vector<32x32xf32>, vector<4x32xf32> -> vector<4x32xf32>
    %69 = vector.broadcast %38 : vector<1x32xf32> to vector<4x32xf32>
    %70 = arith.addf %68, %69 : vector<4x32xf32>
    %71 = arith.mulf %54, %70 : vector<4x32xf32>
    %72 = arith.addf %67, %71 : vector<4x32xf32>
    %73 = math.tanh %72 : vector<4x32xf32>
    %cst_57 = arith.constant 1.000000e+00 : f32
    %74 = vector.broadcast %cst_57 : f32 to vector<4x32xf32>
    %75 = arith.subf %74, %64 : vector<4x32xf32>
    %76 = arith.mulf %75, %73 : vector<4x32xf32>
    %77 = arith.mulf %64, %44 : vector<4x32xf32>
    %78 = arith.addf %76, %77 : vector<4x32xf32>
    %79 = arith.index_cast %c0_i32_43 : i32 to index
    %c0_58 = arith.constant 0 : index
    %c0_59 = arith.constant 0 : index
    %80 = vector.load %arg11[%79, %c0_58, %c0_59] : memref<8x4x32xf32, #tpu.memory_space<vmem>>, vector<1x4x32xf32>
    %81 = vector.shape_cast %80 : vector<1x4x32xf32> to vector<4x32xf32>
    %82 = vector.shape_cast %78 : vector<4x32xf32> to vector<1x4x32xf32>
    tpu.vector_store %arg11[%79, %c0_58, %c0_59], %82 {strides = array<i32>} : memref<8x4x32xf32, #tpu.memory_space<vmem>>, vector<1x4x32xf32>,
    %c1_i32 = arith.constant 1 : i32
    %83 = arith.index_cast %c1_i32 : i32 to index
    %c0_60 = arith.constant 0 : index
    %c0_61 = arith.constant 0 : index
    %84 = vector.load %arg3[%83, %c0_60, %c0_61] : memref<8x4x1xf32, #tpu.memory_space<vmem>>, vector<1x4x1xf32>
    %85 = vector.shape_cast %84 : vector<1x4x1xf32> to vector<4x1xf32>
    %86 = vector.broadcast %85 : vector<4x1xf32> to vector<4x32xf32>
    %87 = arith.mulf %78, %86 : vector<4x32xf32>
    %88 = arith.index_cast %c1_i32 : i32 to index
    %c0_62 = arith.constant 0 : index
    %c0_63 = arith.constant 0 : index
    %89 = vector.load %arg14[%88, %c0_62, %c0_63] : memref<8x4x32xf32, #tpu.memory_space<vmem>>, vector<1x4x32xf32>
    %90 = vector.shape_cast %89 : vector<1x4x32xf32> to vector<4x32xf32>
    %cst_64 = arith.constant dense<0.000000e+00> : vector<4x32xf32>
    %91 = tpu.matmul %87, %33, %cst_64 {dimension_numbers = #tpu.dot_dimension_numbers<[1], [0], [0], [1], [0, 0, 1, 1], [], []>} : vector<4x32xf32>, vector<32x32xf32>, vector<4x32xf32> -> vector<4x32xf32>
    %92 = arith.addf %90, %91 : vector<4x32xf32>
    %93 = arith.negf %92 : vector<4x32xf32>
    %94 = math.exp %93 : vector<4x32xf32>
    %cst_65 = arith.constant 1.000000e+00 : f32
    %95 = vector.broadcast %cst_65 : f32 to vector<4x32xf32>
    %96 = arith.addf %95, %94 : vector<4x32xf32>
    %97 = arith.divf %95, %96 : vector<4x32xf32>
    %98 = arith.index_cast %c1_i32 : i32 to index
    %c0_66 = arith.constant 0 : index
    %c0_67 = arith.constant 0 : index
    %99 = vector.load %arg15[%98, %c0_66, %c0_67] : memref<8x4x32xf32, #tpu.memory_space<vmem>>, vector<1x4x32xf32>
    %100 = vector.shape_cast %99 : vector<1x4x32xf32> to vector<4x32xf32>
    %cst_68 = arith.constant dense<0.000000e+00> : vector<4x32xf32>
    %101 = tpu.matmul %87, %35, %cst_68 {dimension_numbers = #tpu.dot_dimension_numbers<[1], [0], [0], [1], [0, 0, 1, 1], [], []>} : vector<4x32xf32>, vector<32x32xf32>, vector<4x32xf32> -> vector<4x32xf32>
    %102 = arith.addf %100, %101 : vector<4x32xf32>
    %103 = arith.negf %102 : vector<4x32xf32>
    %104 = math.exp %103 : vector<4x32xf32>
    %cst_69 = arith.constant 1.000000e+00 : f32
    %105 = vector.broadcast %cst_69 : f32 to vector<4x32xf32>
    %106 = arith.addf %105, %104 : vector<4x32xf32>
    %107 = arith.divf %105, %106 : vector<4x32xf32>
    %108 = arith.index_cast %c1_i32 : i32 to index
    %c0_70 = arith.constant 0 : index
    %c0_71 = arith.constant 0 : index
    %109 = vector.load %arg16[%108, %c0_70, %c0_71] : memref<8x4x32xf32, #tpu.memory_space<vmem>>, vector<1x4x32xf32>
    %110 = vector.shape_cast %109 : vector<1x4x32xf32> to vector<4x32xf32>
    %cst_72 = arith.constant dense<0.000000e+00> : vector<4x32xf32>
    %111 = tpu.matmul %87, %37, %cst_72 {dimension_numbers = #tpu.dot_dimension_numbers<[1], [0], [0], [1], [0, 0, 1, 1], [], []>} : vector<4x32xf32>, vector<32x32xf32>, vector<4x32xf32> -> vector<4x32xf32>
    %112 = vector.broadcast %38 : vector<1x32xf32> to vector<4x32xf32>
    %113 = arith.addf %111, %112 : vector<4x32xf32>
    %114 = arith.mulf %97, %113 : vector<4x32xf32>
    %115 = arith.addf %110, %114 : vector<4x32xf32>
    %116 = math.tanh %115 : vector<4x32xf32>
    %cst_73 = arith.constant 1.000000e+00 : f32
    %117 = vector.broadcast %cst_73 : f32 to vector<4x32xf32>
    %118 = arith.subf %117, %107 : vector<4x32xf32>
    %119 = arith.mulf %118, %116 : vector<4x32xf32>
    %120 = arith.mulf %107, %87 : vector<4x32xf32>
    %121 = arith.addf %119, %120 : vector<4x32xf32>
    %122 = arith.index_cast %c1_i32 : i32 to index
    %c0_74 = arith.constant 0 : index
    %c0_75 = arith.constant 0 : index
    %123 = vector.load %arg11[%122, %c0_74, %c0_75] : memref<8x4x32xf32, #tpu.memory_space<vmem>>, vector<1x4x32xf32>
    %124 = vector.shape_cast %123 : vector<1x4x32xf32> to vector<4x32xf32>
    %125 = vector.shape_cast %121 : vector<4x32xf32> to vector<1x4x32xf32>
    tpu.vector_store %arg11[%122, %c0_74, %c0_75], %125 {strides = array<i32>} : memref<8x4x32xf32, #tpu.memory_space<vmem>>, vector<1x4x32xf32>,
    %c2_i32 = arith.constant 2 : i32
    %126 = arith.index_cast %c2_i32 : i32 to index
    %c0_76 = arith.constant 0 : index
    %c0_77 = arith.constant 0 : index
    %127 = vector.load %arg3[%126, %c0_76, %c0_77] : memref<8x4x1xf32, #tpu.memory_space<vmem>>, vector<1x4x1xf32>
    %128 = vector.shape_cast %127 : vector<1x4x1xf32> to vector<4x1xf32>
    %129 = vector.broadcast %128 : vector<4x1xf32> to vector<4x32xf32>
    %130 = arith.mulf %121, %129 : vector<4x32xf32>
    %131 = arith.index_cast %c2_i32 : i32 to index
    %c0_78 = arith.constant 0 : index
    %c0_79 = arith.constant 0 : index
    %132 = vector.load %arg14[%131, %c0_78, %c0_79] : memref<8x4x32xf32, #tpu.memory_space<vmem>>, vector<1x4x32xf32>
    %133 = vector.shape_cast %132 : vector<1x4x32xf32> to vector<4x32xf32>
    %cst_80 = arith.constant dense<0.000000e+00> : vector<4x32xf32>
    %134 = tpu.matmul %130, %33, %cst_80 {dimension_numbers = #tpu.dot_dimension_numbers<[1], [0], [0], [1], [0, 0, 1, 1], [], []>} : vector<4x32xf32>, vector<32x32xf32>, vector<4x32xf32> -> vector<4x32xf32>
    %135 = arith.addf %133, %134 : vector<4x32xf32>
    %136 = arith.negf %135 : vector<4x32xf32>
    %137 = math.exp %136 : vector<4x32xf32>
    %cst_81 = arith.constant 1.000000e+00 : f32
    %138 = vector.broadcast %cst_81 : f32 to vector<4x32xf32>
    %139 = arith.addf %138, %137 : vector<4x32xf32>
    %140 = arith.divf %138, %139 : vector<4x32xf32>
    %141 = arith.index_cast %c2_i32 : i32 to index
    %c0_82 = arith.constant 0 : index
    %c0_83 = arith.constant 0 : index
    %142 = vector.load %arg15[%141, %c0_82, %c0_83] : memref<8x4x32xf32, #tpu.memory_space<vmem>>, vector<1x4x32xf32>
    %143 = vector.shape_cast %142 : vector<1x4x32xf32> to vector<4x32xf32>
    %cst_84 = arith.constant dense<0.000000e+00> : vector<4x32xf32>
    %144 = tpu.matmul %130, %35, %cst_84 {dimension_numbers = #tpu.dot_dimension_numbers<[1], [0], [0], [1], [0, 0, 1, 1], [], []>} : vector<4x32xf32>, vector<32x32xf32>, vector<4x32xf32> -> vector<4x32xf32>
    %145 = arith.addf %143, %144 : vector<4x32xf32>
    %146 = arith.negf %145 : vector<4x32xf32>
    %147 = math.exp %146 : vector<4x32xf32>
    %cst_85 = arith.constant 1.000000e+00 : f32
    %148 = vector.broadcast %cst_85 : f32 to vector<4x32xf32>
    %149 = arith.addf %148, %147 : vector<4x32xf32>
    %150 = arith.divf %148, %149 : vector<4x32xf32>
    %151 = arith.index_cast %c2_i32 : i32 to index
    %c0_86 = arith.constant 0 : index
    %c0_87 = arith.constant 0 : index
    %152 = vector.load %arg16[%151, %c0_86, %c0_87] : memref<8x4x32xf32, #tpu.memory_space<vmem>>, vector<1x4x32xf32>
    %153 = vector.shape_cast %152 : vector<1x4x32xf32> to vector<4x32xf32>
    %cst_88 = arith.constant dense<0.000000e+00> : vector<4x32xf32>
    %154 = tpu.matmul %130, %37, %cst_88 {dimension_numbers = #tpu.dot_dimension_numbers<[1], [0], [0], [1], [0, 0, 1, 1], [], []>} : vector<4x32xf32>, vector<32x32xf32>, vector<4x32xf32> -> vector<4x32xf32>
    %155 = vector.broadcast %38 : vector<1x32xf32> to vector<4x32xf32>
    %156 = arith.addf %154, %155 : vector<4x32xf32>
    %157 = arith.mulf %140, %156 : vector<4x32xf32>
    %158 = arith.addf %153, %157 : vector<4x32xf32>
    %159 = math.tanh %158 : vector<4x32xf32>
    %cst_89 = arith.constant 1.000000e+00 : f32
    %160 = vector.broadcast %cst_89 : f32 to vector<4x32xf32>
    %161 = arith.subf %160, %150 : vector<4x32xf32>
    %162 = arith.mulf %161, %159 : vector<4x32xf32>
    %163 = arith.mulf %150, %130 : vector<4x32xf32>
    %164 = arith.addf %162, %163 : vector<4x32xf32>
    %165 = arith.index_cast %c2_i32 : i32 to index
    %c0_90 = arith.constant 0 : index
    %c0_91 = arith.constant 0 : index
    %166 = vector.load %arg11[%165, %c0_90, %c0_91] : memref<8x4x32xf32, #tpu.memory_space<vmem>>, vector<1x4x32xf32>
    %167 = vector.shape_cast %166 : vector<1x4x32xf32> to vector<4x32xf32>
    %168 = vector.shape_cast %164 : vector<4x32xf32> to vector<1x4x32xf32>
    tpu.vector_store %arg11[%165, %c0_90, %c0_91], %168 {strides = array<i32>} : memref<8x4x32xf32, #tpu.memory_space<vmem>>, vector<1x4x32xf32>,
    %c3_i32 = arith.constant 3 : i32
    %169 = arith.index_cast %c3_i32 : i32 to index
    %c0_92 = arith.constant 0 : index
    %c0_93 = arith.constant 0 : index
    %170 = vector.load %arg3[%169, %c0_92, %c0_93] : memref<8x4x1xf32, #tpu.memory_space<vmem>>, vector<1x4x1xf32>
    %171 = vector.shape_cast %170 : vector<1x4x1xf32> to vector<4x1xf32>
    %172 = vector.broadcast %171 : vector<4x1xf32> to vector<4x32xf32>
    %173 = arith.mulf %164, %172 : vector<4x32xf32>
    %174 = arith.index_cast %c3_i32 : i32 to index
    %c0_94 = arith.constant 0 : index
    %c0_95 = arith.constant 0 : index
    %175 = vector.load %arg14[%174, %c0_94, %c0_95] : memref<8x4x32xf32, #tpu.memory_space<vmem>>, vector<1x4x32xf32>
    %176 = vector.shape_cast %175 : vector<1x4x32xf32> to vector<4x32xf32>
    %cst_96 = arith.constant dense<0.000000e+00> : vector<4x32xf32>
    %177 = tpu.matmul %173, %33, %cst_96 {dimension_numbers = #tpu.dot_dimension_numbers<[1], [0], [0], [1], [0, 0, 1, 1], [], []>} : vector<4x32xf32>, vector<32x32xf32>, vector<4x32xf32> -> vector<4x32xf32>
    %178 = arith.addf %176, %177 : vector<4x32xf32>
    %179 = arith.negf %178 : vector<4x32xf32>
    %180 = math.exp %179 : vector<4x32xf32>
    %cst_97 = arith.constant 1.000000e+00 : f32
    %181 = vector.broadcast %cst_97 : f32 to vector<4x32xf32>
    %182 = arith.addf %181, %180 : vector<4x32xf32>
    %183 = arith.divf %181, %182 : vector<4x32xf32>
    %184 = arith.index_cast %c3_i32 : i32 to index
    %c0_98 = arith.constant 0 : index
    %c0_99 = arith.constant 0 : index
    %185 = vector.load %arg15[%184, %c0_98, %c0_99] : memref<8x4x32xf32, #tpu.memory_space<vmem>>, vector<1x4x32xf32>
    %186 = vector.shape_cast %185 : vector<1x4x32xf32> to vector<4x32xf32>
    %cst_100 = arith.constant dense<0.000000e+00> : vector<4x32xf32>
    %187 = tpu.matmul %173, %35, %cst_100 {dimension_numbers = #tpu.dot_dimension_numbers<[1], [0], [0], [1], [0, 0, 1, 1], [], []>} : vector<4x32xf32>, vector<32x32xf32>, vector<4x32xf32> -> vector<4x32xf32>
    %188 = arith.addf %186, %187 : vector<4x32xf32>
    %189 = arith.negf %188 : vector<4x32xf32>
    %190 = math.exp %189 : vector<4x32xf32>
    %cst_101 = arith.constant 1.000000e+00 : f32
    %191 = vector.broadcast %cst_101 : f32 to vector<4x32xf32>
    %192 = arith.addf %191, %190 : vector<4x32xf32>
    %193 = arith.divf %191, %192 : vector<4x32xf32>
    %194 = arith.index_cast %c3_i32 : i32 to index
    %c0_102 = arith.constant 0 : index
    %c0_103 = arith.constant 0 : index
    %195 = vector.load %arg16[%194, %c0_102, %c0_103] : memref<8x4x32xf32, #tpu.memory_space<vmem>>, vector<1x4x32xf32>
    %196 = vector.shape_cast %195 : vector<1x4x32xf32> to vector<4x32xf32>
    %cst_104 = arith.constant dense<0.000000e+00> : vector<4x32xf32>
    %197 = tpu.matmul %173, %37, %cst_104 {dimension_numbers = #tpu.dot_dimension_numbers<[1], [0], [0], [1], [0, 0, 1, 1], [], []>} : vector<4x32xf32>, vector<32x32xf32>, vector<4x32xf32> -> vector<4x32xf32>
    %198 = vector.broadcast %38 : vector<1x32xf32> to vector<4x32xf32>
    %199 = arith.addf %197, %198 : vector<4x32xf32>
    %200 = arith.mulf %183, %199 : vector<4x32xf32>
    %201 = arith.addf %196, %200 : vector<4x32xf32>
    %202 = math.tanh %201 : vector<4x32xf32>
    %cst_105 = arith.constant 1.000000e+00 : f32
    %203 = vector.broadcast %cst_105 : f32 to vector<4x32xf32>
    %204 = arith.subf %203, %193 : vector<4x32xf32>
    %205 = arith.mulf %204, %202 : vector<4x32xf32>
    %206 = arith.mulf %193, %173 : vector<4x32xf32>
    %207 = arith.addf %205, %206 : vector<4x32xf32>
    %208 = arith.index_cast %c3_i32 : i32 to index
    %c0_106 = arith.constant 0 : index
    %c0_107 = arith.constant 0 : index
    %209 = vector.load %arg11[%208, %c0_106, %c0_107] : memref<8x4x32xf32, #tpu.memory_space<vmem>>, vector<1x4x32xf32>
    %210 = vector.shape_cast %209 : vector<1x4x32xf32> to vector<4x32xf32>
    %211 = vector.shape_cast %207 : vector<4x32xf32> to vector<1x4x32xf32>
    tpu.vector_store %arg11[%208, %c0_106, %c0_107], %211 {strides = array<i32>} : memref<8x4x32xf32, #tpu.memory_space<vmem>>, vector<1x4x32xf32>,
    %c4_i32 = arith.constant 4 : i32
    %212 = arith.index_cast %c4_i32 : i32 to index
    %c0_108 = arith.constant 0 : index
    %c0_109 = arith.constant 0 : index
    %213 = vector.load %arg3[%212, %c0_108, %c0_109] : memref<8x4x1xf32, #tpu.memory_space<vmem>>, vector<1x4x1xf32>
    %214 = vector.shape_cast %213 : vector<1x4x1xf32> to vector<4x1xf32>
    %215 = vector.broadcast %214 : vector<4x1xf32> to vector<4x32xf32>
    %216 = arith.mulf %207, %215 : vector<4x32xf32>
    %217 = arith.index_cast %c4_i32 : i32 to index
    %c0_110 = arith.constant 0 : index
    %c0_111 = arith.constant 0 : index
    %218 = vector.load %arg14[%217, %c0_110, %c0_111] : memref<8x4x32xf32, #tpu.memory_space<vmem>>, vector<1x4x32xf32>
    %219 = vector.shape_cast %218 : vector<1x4x32xf32> to vector<4x32xf32>
    %cst_112 = arith.constant dense<0.000000e+00> : vector<4x32xf32>
    %220 = tpu.matmul %216, %33, %cst_112 {dimension_numbers = #tpu.dot_dimension_numbers<[1], [0], [0], [1], [0, 0, 1, 1], [], []>} : vector<4x32xf32>, vector<32x32xf32>, vector<4x32xf32> -> vector<4x32xf32>
    %221 = arith.addf %219, %220 : vector<4x32xf32>
    %222 = arith.negf %221 : vector<4x32xf32>
    %223 = math.exp %222 : vector<4x32xf32>
    %cst_113 = arith.constant 1.000000e+00 : f32
    %224 = vector.broadcast %cst_113 : f32 to vector<4x32xf32>
    %225 = arith.addf %224, %223 : vector<4x32xf32>
    %226 = arith.divf %224, %225 : vector<4x32xf32>
    %227 = arith.index_cast %c4_i32 : i32 to index
    %c0_114 = arith.constant 0 : index
    %c0_115 = arith.constant 0 : index
    %228 = vector.load %arg15[%227, %c0_114, %c0_115] : memref<8x4x32xf32, #tpu.memory_space<vmem>>, vector<1x4x32xf32>
    %229 = vector.shape_cast %228 : vector<1x4x32xf32> to vector<4x32xf32>
    %cst_116 = arith.constant dense<0.000000e+00> : vector<4x32xf32>
    %230 = tpu.matmul %216, %35, %cst_116 {dimension_numbers = #tpu.dot_dimension_numbers<[1], [0], [0], [1], [0, 0, 1, 1], [], []>} : vector<4x32xf32>, vector<32x32xf32>, vector<4x32xf32> -> vector<4x32xf32>
    %231 = arith.addf %229, %230 : vector<4x32xf32>
    %232 = arith.negf %231 : vector<4x32xf32>
    %233 = math.exp %232 : vector<4x32xf32>
    %cst_117 = arith.constant 1.000000e+00 : f32
    %234 = vector.broadcast %cst_117 : f32 to vector<4x32xf32>
    %235 = arith.addf %234, %233 : vector<4x32xf32>
    %236 = arith.divf %234, %235 : vector<4x32xf32>
    %237 = arith.index_cast %c4_i32 : i32 to index
    %c0_118 = arith.constant 0 : index
    %c0_119 = arith.constant 0 : index
    %238 = vector.load %arg16[%237, %c0_118, %c0_119] : memref<8x4x32xf32, #tpu.memory_space<vmem>>, vector<1x4x32xf32>
    %239 = vector.shape_cast %238 : vector<1x4x32xf32> to vector<4x32xf32>
    %cst_120 = arith.constant dense<0.000000e+00> : vector<4x32xf32>
    %240 = tpu.matmul %216, %37, %cst_120 {dimension_numbers = #tpu.dot_dimension_numbers<[1], [0], [0], [1], [0, 0, 1, 1], [], []>} : vector<4x32xf32>, vector<32x32xf32>, vector<4x32xf32> -> vector<4x32xf32>
    %241 = vector.broadcast %38 : vector<1x32xf32> to vector<4x32xf32>
    %242 = arith.addf %240, %241 : vector<4x32xf32>
    %243 = arith.mulf %226, %242 : vector<4x32xf32>
    %244 = arith.addf %239, %243 : vector<4x32xf32>
    %245 = math.tanh %244 : vector<4x32xf32>
    %cst_121 = arith.constant 1.000000e+00 : f32
    %246 = vector.broadcast %cst_121 : f32 to vector<4x32xf32>
    %247 = arith.subf %246, %236 : vector<4x32xf32>
    %248 = arith.mulf %247, %245 : vector<4x32xf32>
    %249 = arith.mulf %236, %216 : vector<4x32xf32>
    %250 = arith.addf %248, %249 : vector<4x32xf32>
    %251 = arith.index_cast %c4_i32 : i32 to index
    %c0_122 = arith.constant 0 : index
    %c0_123 = arith.constant 0 : index
    %252 = vector.load %arg11[%251, %c0_122, %c0_123] : memref<8x4x32xf32, #tpu.memory_space<vmem>>, vector<1x4x32xf32>
    %253 = vector.shape_cast %252 : vector<1x4x32xf32> to vector<4x32xf32>
    %254 = vector.shape_cast %250 : vector<4x32xf32> to vector<1x4x32xf32>
    tpu.vector_store %arg11[%251, %c0_122, %c0_123], %254 {strides = array<i32>} : memref<8x4x32xf32, #tpu.memory_space<vmem>>, vector<1x4x32xf32>,
    %c5_i32 = arith.constant 5 : i32
    %255 = arith.index_cast %c5_i32 : i32 to index
    %c0_124 = arith.constant 0 : index
    %c0_125 = arith.constant 0 : index
    %256 = vector.load %arg3[%255, %c0_124, %c0_125] : memref<8x4x1xf32, #tpu.memory_space<vmem>>, vector<1x4x1xf32>
    %257 = vector.shape_cast %256 : vector<1x4x1xf32> to vector<4x1xf32>
    %258 = vector.broadcast %257 : vector<4x1xf32> to vector<4x32xf32>
    %259 = arith.mulf %250, %258 : vector<4x32xf32>
    %260 = arith.index_cast %c5_i32 : i32 to index
    %c0_126 = arith.constant 0 : index
    %c0_127 = arith.constant 0 : index
    %261 = vector.load %arg14[%260, %c0_126, %c0_127] : memref<8x4x32xf32, #tpu.memory_space<vmem>>, vector<1x4x32xf32>
    %262 = vector.shape_cast %261 : vector<1x4x32xf32> to vector<4x32xf32>
    %cst_128 = arith.constant dense<0.000000e+00> : vector<4x32xf32>
    %263 = tpu.matmul %259, %33, %cst_128 {dimension_numbers = #tpu.dot_dimension_numbers<[1], [0], [0], [1], [0, 0, 1, 1], [], []>} : vector<4x32xf32>, vector<32x32xf32>, vector<4x32xf32> -> vector<4x32xf32>
    %264 = arith.addf %262, %263 : vector<4x32xf32>
    %265 = arith.negf %264 : vector<4x32xf32>
    %266 = math.exp %265 : vector<4x32xf32>
    %cst_129 = arith.constant 1.000000e+00 : f32
    %267 = vector.broadcast %cst_129 : f32 to vector<4x32xf32>
    %268 = arith.addf %267, %266 : vector<4x32xf32>
    %269 = arith.divf %267, %268 : vector<4x32xf32>
    %270 = arith.index_cast %c5_i32 : i32 to index
    %c0_130 = arith.constant 0 : index
    %c0_131 = arith.constant 0 : index
    %271 = vector.load %arg15[%270, %c0_130, %c0_131] : memref<8x4x32xf32, #tpu.memory_space<vmem>>, vector<1x4x32xf32>
    %272 = vector.shape_cast %271 : vector<1x4x32xf32> to vector<4x32xf32>
    %cst_132 = arith.constant dense<0.000000e+00> : vector<4x32xf32>
    %273 = tpu.matmul %259, %35, %cst_132 {dimension_numbers = #tpu.dot_dimension_numbers<[1], [0], [0], [1], [0, 0, 1, 1], [], []>} : vector<4x32xf32>, vector<32x32xf32>, vector<4x32xf32> -> vector<4x32xf32>
    %274 = arith.addf %272, %273 : vector<4x32xf32>
    %275 = arith.negf %274 : vector<4x32xf32>
    %276 = math.exp %275 : vector<4x32xf32>
    %cst_133 = arith.constant 1.000000e+00 : f32
    %277 = vector.broadcast %cst_133 : f32 to vector<4x32xf32>
    %278 = arith.addf %277, %276 : vector<4x32xf32>
    %279 = arith.divf %277, %278 : vector<4x32xf32>
    %280 = arith.index_cast %c5_i32 : i32 to index
    %c0_134 = arith.constant 0 : index
    %c0_135 = arith.constant 0 : index
    %281 = vector.load %arg16[%280, %c0_134, %c0_135] : memref<8x4x32xf32, #tpu.memory_space<vmem>>, vector<1x4x32xf32>
    %282 = vector.shape_cast %281 : vector<1x4x32xf32> to vector<4x32xf32>
    %cst_136 = arith.constant dense<0.000000e+00> : vector<4x32xf32>
    %283 = tpu.matmul %259, %37, %cst_136 {dimension_numbers = #tpu.dot_dimension_numbers<[1], [0], [0], [1], [0, 0, 1, 1], [], []>} : vector<4x32xf32>, vector<32x32xf32>, vector<4x32xf32> -> vector<4x32xf32>
    %284 = vector.broadcast %38 : vector<1x32xf32> to vector<4x32xf32>
    %285 = arith.addf %283, %284 : vector<4x32xf32>
    %286 = arith.mulf %269, %285 : vector<4x32xf32>
    %287 = arith.addf %282, %286 : vector<4x32xf32>
    %288 = math.tanh %287 : vector<4x32xf32>
    %cst_137 = arith.constant 1.000000e+00 : f32
    %289 = vector.broadcast %cst_137 : f32 to vector<4x32xf32>
    %290 = arith.subf %289, %279 : vector<4x32xf32>
    %291 = arith.mulf %290, %288 : vector<4x32xf32>
    %292 = arith.mulf %279, %259 : vector<4x32xf32>
    %293 = arith.addf %291, %292 : vector<4x32xf32>
    %294 = arith.index_cast %c5_i32 : i32 to index
    %c0_138 = arith.constant 0 : index
    %c0_139 = arith.constant 0 : index
    %295 = vector.load %arg11[%294, %c0_138, %c0_139] : memref<8x4x32xf32, #tpu.memory_space<vmem>>, vector<1x4x32xf32>
    %296 = vector.shape_cast %295 : vector<1x4x32xf32> to vector<4x32xf32>
    %297 = vector.shape_cast %293 : vector<4x32xf32> to vector<1x4x32xf32>
    tpu.vector_store %arg11[%294, %c0_138, %c0_139], %297 {strides = array<i32>} : memref<8x4x32xf32, #tpu.memory_space<vmem>>, vector<1x4x32xf32>,
    %c6_i32 = arith.constant 6 : i32
    %298 = arith.index_cast %c6_i32 : i32 to index
    %c0_140 = arith.constant 0 : index
    %c0_141 = arith.constant 0 : index
    %299 = vector.load %arg3[%298, %c0_140, %c0_141] : memref<8x4x1xf32, #tpu.memory_space<vmem>>, vector<1x4x1xf32>
    %300 = vector.shape_cast %299 : vector<1x4x1xf32> to vector<4x1xf32>
    %301 = vector.broadcast %300 : vector<4x1xf32> to vector<4x32xf32>
    %302 = arith.mulf %293, %301 : vector<4x32xf32>
    %303 = arith.index_cast %c6_i32 : i32 to index
    %c0_142 = arith.constant 0 : index
    %c0_143 = arith.constant 0 : index
    %304 = vector.load %arg14[%303, %c0_142, %c0_143] : memref<8x4x32xf32, #tpu.memory_space<vmem>>, vector<1x4x32xf32>
    %305 = vector.shape_cast %304 : vector<1x4x32xf32> to vector<4x32xf32>
    %cst_144 = arith.constant dense<0.000000e+00> : vector<4x32xf32>
    %306 = tpu.matmul %302, %33, %cst_144 {dimension_numbers = #tpu.dot_dimension_numbers<[1], [0], [0], [1], [0, 0, 1, 1], [], []>} : vector<4x32xf32>, vector<32x32xf32>, vector<4x32xf32> -> vector<4x32xf32>
    %307 = arith.addf %305, %306 : vector<4x32xf32>
    %308 = arith.negf %307 : vector<4x32xf32>
    %309 = math.exp %308 : vector<4x32xf32>
    %cst_145 = arith.constant 1.000000e+00 : f32
    %310 = vector.broadcast %cst_145 : f32 to vector<4x32xf32>
    %311 = arith.addf %310, %309 : vector<4x32xf32>
    %312 = arith.divf %310, %311 : vector<4x32xf32>
    %313 = arith.index_cast %c6_i32 : i32 to index
    %c0_146 = arith.constant 0 : index
    %c0_147 = arith.constant 0 : index
    %314 = vector.load %arg15[%313, %c0_146, %c0_147] : memref<8x4x32xf32, #tpu.memory_space<vmem>>, vector<1x4x32xf32>
    %315 = vector.shape_cast %314 : vector<1x4x32xf32> to vector<4x32xf32>
    %cst_148 = arith.constant dense<0.000000e+00> : vector<4x32xf32>
    %316 = tpu.matmul %302, %35, %cst_148 {dimension_numbers = #tpu.dot_dimension_numbers<[1], [0], [0], [1], [0, 0, 1, 1], [], []>} : vector<4x32xf32>, vector<32x32xf32>, vector<4x32xf32> -> vector<4x32xf32>
    %317 = arith.addf %315, %316 : vector<4x32xf32>
    %318 = arith.negf %317 : vector<4x32xf32>
    %319 = math.exp %318 : vector<4x32xf32>
    %cst_149 = arith.constant 1.000000e+00 : f32
    %320 = vector.broadcast %cst_149 : f32 to vector<4x32xf32>
    %321 = arith.addf %320, %319 : vector<4x32xf32>
    %322 = arith.divf %320, %321 : vector<4x32xf32>
    %323 = arith.index_cast %c6_i32 : i32 to index
    %c0_150 = arith.constant 0 : index
    %c0_151 = arith.constant 0 : index
    %324 = vector.load %arg16[%323, %c0_150, %c0_151] : memref<8x4x32xf32, #tpu.memory_space<vmem>>, vector<1x4x32xf32>
    %325 = vector.shape_cast %324 : vector<1x4x32xf32> to vector<4x32xf32>
    %cst_152 = arith.constant dense<0.000000e+00> : vector<4x32xf32>
    %326 = tpu.matmul %302, %37, %cst_152 {dimension_numbers = #tpu.dot_dimension_numbers<[1], [0], [0], [1], [0, 0, 1, 1], [], []>} : vector<4x32xf32>, vector<32x32xf32>, vector<4x32xf32> -> vector<4x32xf32>
    %327 = vector.broadcast %38 : vector<1x32xf32> to vector<4x32xf32>
    %328 = arith.addf %326, %327 : vector<4x32xf32>
    %329 = arith.mulf %312, %328 : vector<4x32xf32>
    %330 = arith.addf %325, %329 : vector<4x32xf32>
    %331 = math.tanh %330 : vector<4x32xf32>
    %cst_153 = arith.constant 1.000000e+00 : f32
    %332 = vector.broadcast %cst_153 : f32 to vector<4x32xf32>
    %333 = arith.subf %332, %322 : vector<4x32xf32>
    %334 = arith.mulf %333, %331 : vector<4x32xf32>
    %335 = arith.mulf %322, %302 : vector<4x32xf32>
    %336 = arith.addf %334, %335 : vector<4x32xf32>
    %337 = arith.index_cast %c6_i32 : i32 to index
    %c0_154 = arith.constant 0 : index
    %c0_155 = arith.constant 0 : index
    %338 = vector.load %arg11[%337, %c0_154, %c0_155] : memref<8x4x32xf32, #tpu.memory_space<vmem>>, vector<1x4x32xf32>
    %339 = vector.shape_cast %338 : vector<1x4x32xf32> to vector<4x32xf32>
    %340 = vector.shape_cast %336 : vector<4x32xf32> to vector<1x4x32xf32>
    tpu.vector_store %arg11[%337, %c0_154, %c0_155], %340 {strides = array<i32>} : memref<8x4x32xf32, #tpu.memory_space<vmem>>, vector<1x4x32xf32>,
    %c7_i32 = arith.constant 7 : i32
    %341 = arith.index_cast %c7_i32 : i32 to index
    %c0_156 = arith.constant 0 : index
    %c0_157 = arith.constant 0 : index
    %342 = vector.load %arg3[%341, %c0_156, %c0_157] : memref<8x4x1xf32, #tpu.memory_space<vmem>>, vector<1x4x1xf32>
    %343 = vector.shape_cast %342 : vector<1x4x1xf32> to vector<4x1xf32>
    %344 = vector.broadcast %343 : vector<4x1xf32> to vector<4x32xf32>
    %345 = arith.mulf %336, %344 : vector<4x32xf32>
    %346 = arith.index_cast %c7_i32 : i32 to index
    %c0_158 = arith.constant 0 : index
    %c0_159 = arith.constant 0 : index
    %347 = vector.load %arg14[%346, %c0_158, %c0_159] : memref<8x4x32xf32, #tpu.memory_space<vmem>>, vector<1x4x32xf32>
    %348 = vector.shape_cast %347 : vector<1x4x32xf32> to vector<4x32xf32>
    %cst_160 = arith.constant dense<0.000000e+00> : vector<4x32xf32>
    %349 = tpu.matmul %345, %33, %cst_160 {dimension_numbers = #tpu.dot_dimension_numbers<[1], [0], [0], [1], [0, 0, 1, 1], [], []>} : vector<4x32xf32>, vector<32x32xf32>, vector<4x32xf32> -> vector<4x32xf32>
    %350 = arith.addf %348, %349 : vector<4x32xf32>
    %351 = arith.negf %350 : vector<4x32xf32>
    %352 = math.exp %351 : vector<4x32xf32>
    %cst_161 = arith.constant 1.000000e+00 : f32
    %353 = vector.broadcast %cst_161 : f32 to vector<4x32xf32>
    %354 = arith.addf %353, %352 : vector<4x32xf32>
    %355 = arith.divf %353, %354 : vector<4x32xf32>
    %356 = arith.index_cast %c7_i32 : i32 to index
    %c0_162 = arith.constant 0 : index
    %c0_163 = arith.constant 0 : index
    %357 = vector.load %arg15[%356, %c0_162, %c0_163] : memref<8x4x32xf32, #tpu.memory_space<vmem>>, vector<1x4x32xf32>
    %358 = vector.shape_cast %357 : vector<1x4x32xf32> to vector<4x32xf32>
    %cst_164 = arith.constant dense<0.000000e+00> : vector<4x32xf32>
    %359 = tpu.matmul %345, %35, %cst_164 {dimension_numbers = #tpu.dot_dimension_numbers<[1], [0], [0], [1], [0, 0, 1, 1], [], []>} : vector<4x32xf32>, vector<32x32xf32>, vector<4x32xf32> -> vector<4x32xf32>
    %360 = arith.addf %358, %359 : vector<4x32xf32>
    %361 = arith.negf %360 : vector<4x32xf32>
    %362 = math.exp %361 : vector<4x32xf32>
    %cst_165 = arith.constant 1.000000e+00 : f32
    %363 = vector.broadcast %cst_165 : f32 to vector<4x32xf32>
    %364 = arith.addf %363, %362 : vector<4x32xf32>
    %365 = arith.divf %363, %364 : vector<4x32xf32>
    %366 = arith.index_cast %c7_i32 : i32 to index
    %c0_166 = arith.constant 0 : index
    %c0_167 = arith.constant 0 : index
    %367 = vector.load %arg16[%366, %c0_166, %c0_167] : memref<8x4x32xf32, #tpu.memory_space<vmem>>, vector<1x4x32xf32>
    %368 = vector.shape_cast %367 : vector<1x4x32xf32> to vector<4x32xf32>
    %cst_168 = arith.constant dense<0.000000e+00> : vector<4x32xf32>
    %369 = tpu.matmul %345, %37, %cst_168 {dimension_numbers = #tpu.dot_dimension_numbers<[1], [0], [0], [1], [0, 0, 1, 1], [], []>} : vector<4x32xf32>, vector<32x32xf32>, vector<4x32xf32> -> vector<4x32xf32>
    %370 = vector.broadcast %38 : vector<1x32xf32> to vector<4x32xf32>
    %371 = arith.addf %369, %370 : vector<4x32xf32>
    %372 = arith.mulf %355, %371 : vector<4x32xf32>
    %373 = arith.addf %368, %372 : vector<4x32xf32>
    %374 = math.tanh %373 : vector<4x32xf32>
    %cst_169 = arith.constant 1.000000e+00 : f32
    %375 = vector.broadcast %cst_169 : f32 to vector<4x32xf32>
    %376 = arith.subf %375, %365 : vector<4x32xf32>
    %377 = arith.mulf %376, %374 : vector<4x32xf32>
    %378 = arith.mulf %365, %345 : vector<4x32xf32>
    %379 = arith.addf %377, %378 : vector<4x32xf32>
    %380 = arith.index_cast %c7_i32 : i32 to index
    %c0_170 = arith.constant 0 : index
    %c0_171 = arith.constant 0 : index
    %381 = vector.load %arg11[%380, %c0_170, %c0_171] : memref<8x4x32xf32, #tpu.memory_space<vmem>>, vector<1x4x32xf32>
    %382 = vector.shape_cast %381 : vector<1x4x32xf32> to vector<4x32xf32>
    %383 = vector.shape_cast %379 : vector<4x32xf32> to vector<1x4x32xf32>
    tpu.vector_store %arg11[%380, %c0_170, %c0_171], %383 {strides = array<i32>} : memref<8x4x32xf32, #tpu.memory_space<vmem>>, vector<1x4x32xf32>,
    %c8_i32 = arith.constant 8 : i32
    %c0_172 = arith.constant 0 : index
    %c0_173 = arith.constant 0 : index
    %384 = vector.load %arg13[%c0_172, %c0_173] : memref<4x32xf32, #tpu.memory_space<vmem>>, vector<4x32xf32>
    tpu.vector_store %arg13[%c0_172, %c0_173], %379 {strides = array<i32>} : memref<4x32xf32, #tpu.memory_space<vmem>>, vector<4x32xf32>,
    %c0_i32_174 = arith.constant 0 : i32
    %385 = arith.cmpi eq, %arg1, %c0_i32_174 : i32
    %386 = arith.extui %385 : i1 to i32
    %c0_i32_175 = arith.constant 0 : i32
    %387 = arith.cmpi ne, %386, %c0_i32_175 : i32
    scf.if %387 {
      %c0_176 = arith.constant 0 : index
      %c0_177 = arith.constant 0 : index
      %388 = vector.load %arg12[%c0_176, %c0_177] : memref<4x32xf32, #tpu.memory_space<vmem>>, vector<4x32xf32>
      tpu.vector_store %arg12[%c0_176, %c0_177], %379 {strides = array<i32>} : memref<4x32xf32, #tpu.memory_space<vmem>>, vector<4x32xf32>,
    } else {
    }
    return
  }
  func.func @transform_0(%arg0: i32, %arg1: i32) -> (i32, i32, i32) {
    %c0_i32 = arith.constant 0 : i32
    %c0_i32_0 = arith.constant 0 : i32
    return %arg1, %arg0, %c0_i32 : i32, i32, i32
  }
  func.func @transform_1(%arg0: i32, %arg1: i32) -> (i32, i32, i32) {
    %c0_i32 = arith.constant 0 : i32
    %c0_i32_0 = arith.constant 0 : i32
    return %arg1, %arg0, %c0_i32 : i32, i32, i32
  }
  func.func @transform_2(%arg0: i32, %arg1: i32) -> (i32, i32) {
    %c0_i32 = arith.constant 0 : i32
    %c0_i32_0 = arith.constant 0 : i32
    return %arg0, %c0_i32 : i32, i32
  }
  func.func @transform_3(%arg0: i32, %arg1: i32) -> (i32, i32, i32) {
    %c0_i32 = arith.constant 0 : i32
    %c0_i32_0 = arith.constant 0 : i32
    %c0_i32_1 = arith.constant 0 : i32
    %c0_i32_2 = arith.constant 0 : i32
    return %c0_i32, %c0_i32_0, %c0_i32_1 : i32, i32, i32
  }
  func.func @transform_4(%arg0: i32, %arg1: i32) -> (i32, i32, i32) {
    %c0_i32 = arith.constant 0 : i32
    %c0_i32_0 = arith.constant 0 : i32
    %c0_i32_1 = arith.constant 0 : i32
    %c0_i32_2 = arith.constant 0 : i32
    return %c0_i32, %c0_i32_0, %c0_i32_1 : i32, i32, i32
  }
  func.func @transform_5(%arg0: i32, %arg1: i32) -> (i32, i32, i32) {
    %c0_i32 = arith.constant 0 : i32
    %c0_i32_0 = arith.constant 0 : i32
    %c0_i32_1 = arith.constant 0 : i32
    %c0_i32_2 = arith.constant 0 : i32
    return %c0_i32, %c0_i32_0, %c0_i32_1 : i32, i32, i32
  }
  func.func @transform_6(%arg0: i32, %arg1: i32) -> (i32, i32) {
    %c0_i32 = arith.constant 0 : i32
    %c0_i32_0 = arith.constant 0 : i32
    %c0_i32_1 = arith.constant 0 : i32
    return %c0_i32, %c0_i32_0 : i32, i32
  }
  func.func @transform_7(%arg0: i32, %arg1: i32) -> (i32, i32) {
    %c0_i32 = arith.constant 0 : i32
    %c0_i32_0 = arith.constant 0 : i32
    %c0_i32_1 = arith.constant 0 : i32
    return %c0_i32, %c0_i32_0 : i32, i32
  }
  func.func @transform_8(%arg0: i32, %arg1: i32) -> (i32, i32) {
    %c0_i32 = arith.constant 0 : i32
    %c0_i32_0 = arith.constant 0 : i32
    %c0_i32_1 = arith.constant 0 : i32
    return %c0_i32, %c0_i32_0 : i32, i32
  }
  func.func @transform_9(%arg0: i32, %arg1: i32) -> (i32, i32, i32) {
    %c0_i32 = arith.constant 0 : i32
    %c0_i32_0 = arith.constant 0 : i32
    return %arg1, %arg0, %c0_i32 : i32, i32, i32
  }
  func.func @transform_10(%arg0: i32, %arg1: i32) -> (i32, i32) {
    %c0_i32 = arith.constant 0 : i32
    %c0_i32_0 = arith.constant 0 : i32
    return %arg0, %c0_i32 : i32, i32
  }
}

</mosaic_0001>

<llo_original>
// kernel: tpu_custom_call.1
$region0: #{tpu_custom_call.1}
  #allocation0 [shape = 'u32[]', space=smem, size = 0x4, offset = 0x4, fixed_abs, tag = 'smem constant byte address 0x4 - core index']
  #allocation1 [shape = 'u32[72,128]{1,0:T(1,128)}', space=vmem, size = 0x9000, scoped, tag = 'internal scratch']
  #allocation2 [shape = 'f32[4,32]{1,0:T(4,128)}', space=vmem, size = 0x800, scoped, tag = 'scratch operand']
  #allocation3 [shape = 'f32[8,4,32]{2,1,0:T(4,128)}', space=vmem, size = 0x4000, scoped, tag = 'scratch operand']
  #allocation4 [shape = 'f32[8,4,32]{2,1,0:T(4,128)}', space=vmem, size = 0x4000, scoped, tag = 'scratch operand']
  #allocation5 [shape = 'f32[8,4,32]{2,1,0:T(4,128)}', space=vmem, size = 0x4000, scoped, tag = 'scratch operand']
  %s0 = inlined_call_operand.vmem [shape: f32[8,4,32], index: 0, kind: input, shape index: {}]
  %s1 = inlined_call_operand.vmem [shape: f32[8,4,1], index: 1, kind: input, shape index: {}]
  %s2 = inlined_call_operand.vmem [shape: f32[4,32], index: 2, kind: input, shape index: {}]
  %s3 = inlined_call_operand.hbm [shape: f32[3,32,32], index: 3, kind: input, shape index: {}]
  %s4 = inlined_call_operand.hbm [shape: f32[3,32,32], index: 4, kind: input, shape index: {}]
  %s5 = inlined_call_operand.vmem [shape: f32[3,1,32], index: 5, kind: input, shape index: {}]
  %s6 = inlined_call_operand.vmem [shape: f32[1,32], index: 6, kind: input, shape index: {}]
  %s7 = inlined_call_operand.vmem [shape: f32[1,32], index: 7, kind: input, shape index: {}]
  %s8 = inlined_call_operand.vmem [shape: f32[1,32], index: 8, kind: input, shape index: {}]
  %s9 = inlined_call_operand.hbm [shape: f32[8,4,32], index: 9, kind: output, shape index: {0}]
  %s10 = inlined_call_operand.hbm [shape: f32[4,32], index: 10, kind: output, shape index: {1}]
  %11 = xla_tuple %s9, %s10
  %s12 = sld [smem:[#allocation0]]
  $region70: #{tpu_custom_call.1} parent=0
    _
  %s14 = ssub.s32 1, %s12
  %s15 = scalar_select 0, %s14, %s12
  $region1: #{tpu_custom_call.1} parent=0
    #allocation6 [shape = 'u8[49152]{0}', space=vmem, size = 0xc000, scoped, tag = 'input window, operand 3, single buffered']
    #allocation7 [shape = 's32[1]{0}', space=sflag, size = 0x4, scoped, tag = 'scoped memory for tpu_custom_call.1']
    #allocation8 [shape = 's32[1]{0}', space=sflag, size = 0x4, scoped, tag = 'scoped memory for tpu_custom_call.1']
    #allocation9 [shape = 'u8[49152]{0}', space=vmem, size = 0xc000, scoped, tag = 'input window, operand 4, single buffered']
    #allocation10 [shape = 's32[1]{0}', space=sflag, size = 0x4, scoped, tag = 'scoped memory for tpu_custom_call.1']
    #allocation11 [shape = 'u8[16384]{0}', space=vmem, size = 0x4000, scoped, tag = 'output window, operand 0, single buffered']
    #allocation12 [shape = 'u8[2048]{0}', space=vmem, size = 0x800, scoped, tag = 'output window, operand 1, single buffered']
    #allocation13 [shape = 's32[1]{0}', space=sflag, size = 0x4, scoped, tag = 'scoped memory for tpu_custom_call.1']
    %16 = vsyncpa [#allocation7], 0
    %17 = vsyncpa [#allocation10], 0
    %18 = vsyncpa [#allocation8], 0
    %19 = vsyncpa [#allocation13], 0
    // Predicated region
    $region2: #{tpu_custom_call.1} parent=1 // pred_check
      _
    $region3: #{tpu_custom_call.1} parent=1 // pred_check_branch
      %21 = sbr.rel (0) target = $region5
    $region4: #{tpu_custom_call.1} parent=1 // pred_region
      _
    $region5: #{tpu_custom_call.1} parent=1 // pred_fallthru
      _
    // Predicated region
    $region6: #{tpu_custom_call.1} parent=1 // pred_check
      _
    $region7: #{tpu_custom_call.1} parent=1 // pred_check_branch
      %23 = sbr.rel (0) target = $region9
    $region8: #{tpu_custom_call.1} parent=1 // pred_region
      _
    $region9: #{tpu_custom_call.1} parent=1 // pred_fallthru
      _
    // Predicated region
    $region10: #{tpu_custom_call.1} parent=1 // pred_check
      _
    $region11: #{tpu_custom_call.1} parent=1 // pred_check_branch
      %25 = sbr.rel (0) target = $region13
    $region12: #{tpu_custom_call.1} parent=1 // pred_region
      _
    $region13: #{tpu_custom_call.1} parent=1 // pred_fallthru
      _
    // Predicated region
    $region14: #{tpu_custom_call.1} parent=1 // pred_check
      _
    $region15: #{tpu_custom_call.1} parent=1 // pred_check_branch
      %27 = sbr.rel (0) target = $region17
    $region16: #{tpu_custom_call.1} parent=1 // pred_region
      %29 = vsyncadd [#allocation7], 0
      %s30 = sshll.u32 %s3, 4
      %s31 = int_to_ptr.hbm [resolvable:$true] %s30
      %s32 = sshll.u32 [#allocation6], 4
      %s33 = int_to_ptr.vmem [resolvable:$true] %s32
      %38 = dma.hbm_to_vmem [thread:$0]  %s31, 1536, %s33, [#allocation7], 128, 128, 8
    $region17: #{tpu_custom_call.1} parent=1 // pred_fallthru
      _
    // Predicated region
    $region18: #{tpu_custom_call.1} parent=1 // pred_check
      _
    $region19: #{tpu_custom_call.1} parent=1 // pred_check_branch
      %40 = sbr.rel (0) target = $region21
    $region20: #{tpu_custom_call.1} parent=1 // pred_region
      %42 = vsyncadd [#allocation10], 0
      %s43 = sshll.u32 %s4, 4
      %s44 = int_to_ptr.hbm [resolvable:$true] %s43
      %s45 = sshll.u32 [#allocation9], 4
      %s46 = int_to_ptr.vmem [resolvable:$true] %s45
      %51 = dma.hbm_to_vmem [thread:$0]  %s44, 1536, %s46, [#allocation10], 128, 128, 8
    $region21: #{tpu_custom_call.1} parent=1 // pred_fallthru
      _
    // Predicated region
    $region22: #{tpu_custom_call.1} parent=1 // pred_check
      _
    $region23: #{tpu_custom_call.1} parent=1 // pred_check_branch
      %53 = sbr.rel (0) target = $region25
    $region24: #{tpu_custom_call.1} parent=1 // pred_region
      _
    $region25: #{tpu_custom_call.1} parent=1 // pred_fallthru
      _
    // Predicated region
    $region26: #{tpu_custom_call.1} parent=1 // pred_check
      _
    $region27: #{tpu_custom_call.1} parent=1 // pred_check_branch
      %55 = sbr.rel (0) target = $region29
    $region28: #{tpu_custom_call.1} parent=1 // pred_region
      _
    $region29: #{tpu_custom_call.1} parent=1 // pred_fallthru
      _
    // Predicated region
    $region30: #{tpu_custom_call.1} parent=1 // pred_check
      _
    $region31: #{tpu_custom_call.1} parent=1 // pred_check_branch
      %57 = sbr.rel (0) target = $region33
    $region32: #{tpu_custom_call.1} parent=1 // pred_region
      _
    $region33: #{tpu_custom_call.1} parent=1 // pred_fallthru
      _
    // Predicated region
    $region34: #{tpu_custom_call.1} parent=1 // pred_check
      _
    $region35: #{tpu_custom_call.1} parent=1 // pred_check_branch
      %59 = sbr.rel (0) target = $region37
    $region36: #{tpu_custom_call.1} parent=1 // pred_region
      _
    $region37: #{tpu_custom_call.1} parent=1 // pred_fallthru
      _
    // Predicated region
    $region38: #{tpu_custom_call.1} parent=1 // pred_check
      _
    $region39: #{tpu_custom_call.1} parent=1 // pred_check_branch
      %61 = sbr.rel (0) target = $region41
    $region40: #{tpu_custom_call.1} parent=1 // pred_region
      %63 = dma.done [#allocation7], 1536
    $region41: #{tpu_custom_call.1} parent=1 // pred_fallthru
      _
    // Predicated region
    $region42: #{tpu_custom_call.1} parent=1 // pred_check
      _
    $region43: #{tpu_custom_call.1} parent=1 // pred_check_branch
      %65 = sbr.rel (0) target = $region45
    $region44: #{tpu_custom_call.1} parent=1 // pred_region
      %67 = dma.done [#allocation10], 1536
    $region45: #{tpu_custom_call.1} parent=1 // pred_fallthru
      _
    %p68 = scmp.eq.s32.totalorder 0, 0
    // Predicated region
    $region46: #{tpu_custom_call.1} parent=1 // pred_check
      %p69 = pneg %p68
    $region47: #{tpu_custom_call.1} parent=1 // pred_check_branch
      %71 = sbr.rel (%p69) target = $region49
    $region48: #{tpu_custom_call.1} parent=1 // pred_region
      %v72 = vld [vmem:[%s2] sm:$0xf]
      %vm73 = vcmask 257024
      %74 = vst.msk [vmem:[#allocation2] sm:$0xf] %vm73, %v72
    $region49: #{tpu_custom_call.1} parent=1 // pred_fallthru
      _
    %v75 = vld [vmem:[%s0] sm:$0xf]
    %v76 = vld [vmem:[%s0 + $0x4] sm:$0xf]
    %v77 = vld [vmem:[%s0 + $0x8] sm:$0xf]
    %v78 = vld [vmem:[%s0 + $0xc] sm:$0xf]
    %v79 = vld [vmem:[%s0 + $0x10] sm:$0xf]
    %v80 = vld [vmem:[%s0 + $0x14] sm:$0xf]
    %v81 = vld [vmem:[%s0 + $0x18] sm:$0xf]
    %v82 = vld [vmem:[%s0 + $0x1c] sm:$0xf]
    %v83 = vld [vmem:[#allocation6] sm:$0xff]
    %v84 = vld [vmem:[#allocation6 + $0x8] sm:$0xff]
    %v85 = vld [vmem:[#allocation6 + $0x10] sm:$0xff]
    %v86 = vld [vmem:[#allocation6 + $0x18] sm:$0xff]
    %v87 = vld [vmem:[%s5] sm:$0x1]
    %v89 = vperm.slane %v87, 0
    %99 = vst [vmem:[#allocation1] ss:$2 sm:$0xff] %v75
    %s100 = scalar_lea.vmem [#allocation1], 1
    %101 = vst [vmem:[%s100] ss:$2 sm:$0xff] %v76
    %s102 = scalar_lea.vmem [#allocation1], 16
    %103 = vst [vmem:[%s102] ss:$2 sm:$0xff] %v77
    %s104 = scalar_lea.vmem [#allocation1], 17
    %105 = vst [vmem:[%s104] ss:$2 sm:$0xff] %v78
    %s106 = scalar_lea.vmem [#allocation1], 32
    %107 = vst [vmem:[%s106] ss:$2 sm:$0xff] %v79
    %s108 = scalar_lea.vmem [#allocation1], 33
    %109 = vst [vmem:[%s108] ss:$2 sm:$0xff] %v80
    %s110 = scalar_lea.vmem [#allocation1], 48
    %111 = vst [vmem:[%s110] ss:$2 sm:$0xff] %v81
    %s112 = scalar_lea.vmem [#allocation1], 49
    %113 = vst [vmem:[%s112] ss:$2 sm:$0xff] %v82
    %v114 = vld.sshfl [vmem:[#allocation1] sm:$0xff pattern:$0x75316420]
    %v115 = vld.sshfl [vmem:[#allocation1 + $0x10] sm:$0xff pattern:$0x75316420]
    %v116 = vld.sshfl [vmem:[#allocation1 + $0x20] sm:$0xff pattern:$0x75316420]
    %v117 = vld.sshfl [vmem:[#allocation1 + $0x30] sm:$0xff pattern:$0x75316420]
    %vm118 = vcmask 261120
    %v119 = vsel %vm118, %v114, 0
    %v121 = vsel %vm118, %v115, 0
    %v123 = vsel %vm118, %v116, 0
    %v125 = vsel %vm118, %v117, 0
    %127 = vmatpush.msra.mxu0 0.0
    %128 = vmatpush.msra.mxu0 0.0
    %129 = vmatpush.msra.mxu0 0.0
    %130 = vmatpush.msra.mxu0 0.0
    %131 = vmatpush.msra.mxu0 0.0
    %132 = vmatpush.msra.mxu0 0.0
    %133 = vmatpush.msra.mxu0 0.0
    %134 = vmatpush.msra.mxu0 0.0
    %135 = vmatpush.msra.mxu0 0.0
    %136 = vmatpush.msra.mxu0 0.0
    %137 = vmatpush.msra.mxu0 0.0
    %138 = vmatpush.msra.mxu0 0.0
    %139 = vmatpush.msra.mxu0 %v86
    %140 = vmatpush.msra.mxu0 %v85
    %141 = vmatpush.msra.mxu0 %v84
    %142 = vmatpush.msra.mxu0 %v83
    %143 = vmatmul.f32.gmra.mxu0 %v119
    %v144 = vpop.f32.mrf.mxu0
    %v145 = vadd.f32 %v89, %v144
    %146 = vmatmul.f32.gmra.mxu0 %v121
    %v147 = vpop.f32.mrf.mxu0
    %v148 = vadd.f32 %v89, %v147
    %149 = vmatmul.f32.gmra.mxu0 %v123
    %v150 = vpop.f32.mrf.mxu0
    %v151 = vadd.f32 %v89, %v150
    %152 = vmatmul.f32.gmra.mxu0 %v125
    %v153 = vpop.f32.mrf.mxu0
    %v154 = vadd.f32 %v89, %v153
    %155 = vdwg.mxu0
    %v160 = vrot.slane %v145, 4
    %v161 = vrot.slane %v148, 4
    %v162 = vrot.slane %v151, 4
    %v163 = vrot.slane %v154, 4
    %vm168 = vcmask 257024
    %169 = vst.msk [vmem:[#allocation3] sm:$0xf] %vm168, %v145
    %170 = vst.msk [vmem:[#allocation3 + $0x4] sm:$0xf] %vm168, %v160
    %171 = vst.msk [vmem:[#allocation3 + $0x8] sm:$0xf] %vm168, %v148
    %172 = vst.msk [vmem:[#allocation3 + $0xc] sm:$0xf] %vm168, %v161
    %173 = vst.msk [vmem:[#allocation3 + $0x10] sm:$0xf] %vm168, %v151
    %174 = vst.msk [vmem:[#allocation3 + $0x14] sm:$0xf] %vm168, %v162
    %175 = vst.msk [vmem:[#allocation3 + $0x18] sm:$0xf] %vm168, %v154
    %176 = vst.msk [vmem:[#allocation3 + $0x1c] sm:$0xf] %vm168, %v163
    %s177 = scalar_lea.vmem [#allocation6], 32
    %v178 = vld [vmem:[%s177] sm:$0xff]
    %v179 = vld [vmem:[%s177 + $0x8] sm:$0xff]
    %v180 = vld [vmem:[%s177 + $0x10] sm:$0xff]
    %v181 = vld [vmem:[%s177 + $0x18] sm:$0xff]
    %s182 = scalar_lea.vmem %s5, 1
    %v183 = vld [vmem:[%s182] sm:$0x1]
    %v185 = vperm.slane %v183, 0
    %187 = vst [vmem:[#allocation1] ss:$2 sm:$0xff] %v75
    %s188 = scalar_lea.vmem [#allocation1], 1
    %189 = vst [vmem:[%s188] ss:$2 sm:$0xff] %v76
    %s190 = scalar_lea.vmem [#allocation1], 16
    %191 = vst [vmem:[%s190] ss:$2 sm:$0xff] %v77
    %s192 = scalar_lea.vmem [#allocation1], 17
    %193 = vst [vmem:[%s192] ss:$2 sm:$0xff] %v78
    %s194 = scalar_lea.vmem [#allocation1], 32
    %195 = vst [vmem:[%s194] ss:$2 sm:$0xff] %v79
    %s196 = scalar_lea.vmem [#allocation1], 33
    %197 = vst [vmem:[%s196] ss:$2 sm:$0xff] %v80
    %s198 = scalar_lea.vmem [#allocation1], 48
    %199 = vst [vmem:[%s198] ss:$2 sm:$0xff] %v81
    %s200 = scalar_lea.vmem [#allocation1], 49
    %201 = vst [vmem:[%s200] ss:$2 sm:$0xff] %v82
    %v202 = vld.sshfl [vmem:[#allocation1] sm:$0xff pattern:$0x75316420]
    %v203 = vld.sshfl [vmem:[#allocation1 + $0x10] sm:$0xff pattern:$0x75316420]
    %v204 = vld.sshfl [vmem:[#allocation1 + $0x20] sm:$0xff pattern:$0x75316420]
    %v205 = vld.sshfl [vmem:[#allocation1 + $0x30] sm:$0xff pattern:$0x75316420]
    %v206 = vsel %vm118, %v202, 0
    %v208 = vsel %vm118, %v203, 0
    %v210 = vsel %vm118, %v204, 0
    %v212 = vsel %vm118, %v205, 0
    %214 = vmatpush.msra.mxu0 0.0
    %215 = vmatpush.msra.mxu0 0.0
    %216 = vmatpush.msra.mxu0 0.0
    %217 = vmatpush.msra.mxu0 0.0
    %218 = vmatpush.msra.mxu0 0.0
    %219 = vmatpush.msra.mxu0 0.0
    %220 = vmatpush.msra.mxu0 0.0
    %221 = vmatpush.msra.mxu0 0.0
    %222 = vmatpush.msra.mxu0 0.0
    %223 = vmatpush.msra.mxu0 0.0
    %224 = vmatpush.msra.mxu0 0.0
    %225 = vmatpush.msra.mxu0 0.0
    %226 = vmatpush.msra.mxu0 %v181
    %227 = vmatpush.msra.mxu0 %v180
    %228 = vmatpush.msra.mxu0 %v179
    %229 = vmatpush.msra.mxu0 %v178
    %230 = vmatmul.f32.gmra.mxu0 %v206
    %v231 = vpop.f32.mrf.mxu0
    %v232 = vadd.f32 %v185, %v231
    %233 = vmatmul.f32.gmra.mxu0 %v208
    %v234 = vpop.f32.mrf.mxu0
    %v235 = vadd.f32 %v185, %v234
    %236 = vmatmul.f32.gmra.mxu0 %v210
    %v237 = vpop.f32.mrf.mxu0
    %v238 = vadd.f32 %v185, %v237
    %239 = vmatmul.f32.gmra.mxu0 %v212
    %v240 = vpop.f32.mrf.mxu0
    %v241 = vadd.f32 %v185, %v240
    %242 = vdwg.mxu0
    %v247 = vrot.slane %v232, 4
    %v248 = vrot.slane %v235, 4
    %v249 = vrot.slane %v238, 4
    %v250 = vrot.slane %v241, 4
    %255 = vst.msk [vmem:[#allocation4] sm:$0xf] %vm168, %v232
    %256 = vst.msk [vmem:[#allocation4 + $0x4] sm:$0xf] %vm168, %v247
    %257 = vst.msk [vmem:[#allocation4 + $0x8] sm:$0xf] %vm168, %v235
    %258 = vst.msk [vmem:[#allocation4 + $0xc] sm:$0xf] %vm168, %v248
    %259 = vst.msk [vmem:[#allocation4 + $0x10] sm:$0xf] %vm168, %v238
    %260 = vst.msk [vmem:[#allocation4 + $0x14] sm:$0xf] %vm168, %v249
    %261 = vst.msk [vmem:[#allocation4 + $0x18] sm:$0xf] %vm168, %v241
    %262 = vst.msk [vmem:[#allocation4 + $0x1c] sm:$0xf] %vm168, %v250
    %s263 = scalar_lea.vmem [#allocation6], 64
    %v264 = vld [vmem:[%s263] sm:$0xff]
    %v265 = vld [vmem:[%s263 + $0x8] sm:$0xff]
    %v266 = vld [vmem:[%s263 + $0x10] sm:$0xff]
    %v267 = vld [vmem:[%s263 + $0x18] sm:$0xff]
    %s268 = scalar_lea.vmem %s5, 2
    %v269 = vld [vmem:[%s268] sm:$0x1]
    %v271 = vperm.slane %v269, 0
    %273 = vst [vmem:[#allocation1] ss:$2 sm:$0xff] %v75
    %s274 = scalar_lea.vmem [#allocation1], 1
    %275 = vst [vmem:[%s274] ss:$2 sm:$0xff] %v76
    %s276 = scalar_lea.vmem [#allocation1], 16
    %277 = vst [vmem:[%s276] ss:$2 sm:$0xff] %v77
    %s278 = scalar_lea.vmem [#allocation1], 17
    %279 = vst [vmem:[%s278] ss:$2 sm:$0xff] %v78
    %s280 = scalar_lea.vmem [#allocation1], 32
    %281 = vst [vmem:[%s280] ss:$2 sm:$0xff] %v79
    %s282 = scalar_lea.vmem [#allocation1], 33
    %283 = vst [vmem:[%s282] ss:$2 sm:$0xff] %v80
    %s284 = scalar_lea.vmem [#allocation1], 48
    %285 = vst [vmem:[%s284] ss:$2 sm:$0xff] %v81
    %s286 = scalar_lea.vmem [#allocation1], 49
    %287 = vst [vmem:[%s286] ss:$2 sm:$0xff] %v82
    %v288 = vld.sshfl [vmem:[#allocation1] sm:$0xff pattern:$0x75316420]
    %v289 = vld.sshfl [vmem:[#allocation1 + $0x10] sm:$0xff pattern:$0x75316420]
    %v290 = vld.sshfl [vmem:[#allocation1 + $0x20] sm:$0xff pattern:$0x75316420]
    %v291 = vld.sshfl [vmem:[#allocation1 + $0x30] sm:$0xff pattern:$0x75316420]
    %v292 = vsel %vm118, %v288, 0
    %v294 = vsel %vm118, %v289, 0
    %v296 = vsel %vm118, %v290, 0
    %v298 = vsel %vm118, %v291, 0
    %300 = vmatpush.msra.mxu0 0.0
    %301 = vmatpush.msra.mxu0 0.0
    %302 = vmatpush.msra.mxu0 0.0
    %303 = vmatpush.msra.mxu0 0.0
    %304 = vmatpush.msra.mxu0 0.0
    %305 = vmatpush.msra.mxu0 0.0
    %306 = vmatpush.msra.mxu0 0.0
    %307 = vmatpush.msra.mxu0 0.0
    %308 = vmatpush.msra.mxu0 0.0
    %309 = vmatpush.msra.mxu0 0.0
    %310 = vmatpush.msra.mxu0 0.0
    %311 = vmatpush.msra.mxu0 0.0
    %312 = vmatpush.msra.mxu0 %v267
    %313 = vmatpush.msra.mxu0 %v266
    %314 = vmatpush.msra.mxu0 %v265
    %315 = vmatpush.msra.mxu0 %v264
    %316 = vmatmul.f32.gmra.mxu0 %v292
    %v317 = vpop.f32.mrf.mxu0
    %v318 = vadd.f32 %v271, %v317
    %319 = vmatmul.f32.gmra.mxu0 %v294
    %v320 = vpop.f32.mrf.mxu0
    %v321 = vadd.f32 %v271, %v320
    %322 = vmatmul.f32.gmra.mxu0 %v296
    %v323 = vpop.f32.mrf.mxu0
    %v324 = vadd.f32 %v271, %v323
    %325 = vmatmul.f32.gmra.mxu0 %v298
    %v326 = vpop.f32.mrf.mxu0
    %v327 = vadd.f32 %v271, %v326
    %328 = vdwg.mxu0
    %v333 = vrot.slane %v318, 4
    %v334 = vrot.slane %v321, 4
    %v335 = vrot.slane %v324, 4
    %v336 = vrot.slane %v327, 4
    %341 = vst.msk [vmem:[#allocation5] sm:$0xf] %vm168, %v318
    %342 = vst.msk [vmem:[#allocation5 + $0x4] sm:$0xf] %vm168, %v333
    %343 = vst.msk [vmem:[#allocation5 + $0x8] sm:$0xf] %vm168, %v321
    %344 = vst.msk [vmem:[#allocation5 + $0xc] sm:$0xf] %vm168, %v334
    %345 = vst.msk [vmem:[#allocation5 + $0x10] sm:$0xf] %vm168, %v324
    %346 = vst.msk [vmem:[#allocation5 + $0x14] sm:$0xf] %vm168, %v335
    %347 = vst.msk [vmem:[#allocation5 + $0x18] sm:$0xf] %vm168, %v327
    %348 = vst.msk [vmem:[#allocation5 + $0x1c] sm:$0xf] %vm168, %v336
    %v349 = vld [vmem:[#allocation9] sm:$0xff]
    %v350 = vld [vmem:[#allocation9 + $0x8] sm:$0xff]
    %v351 = vld [vmem:[#allocation9 + $0x10] sm:$0xff]
    %v352 = vld [vmem:[#allocation9 + $0x18] sm:$0xff]
    %s353 = scalar_lea.vmem [#allocation9], 32
    %v354 = vld [vmem:[%s353] sm:$0xff]
    %v355 = vld [vmem:[%s353 + $0x8] sm:$0xff]
    %v356 = vld [vmem:[%s353 + $0x10] sm:$0xff]
    %v357 = vld [vmem:[%s353 + $0x18] sm:$0xff]
    %s358 = scalar_lea.vmem [#allocation9], 64
    %v359 = vld [vmem:[%s358] sm:$0xff]
    %v360 = vld [vmem:[%s358 + $0x8] sm:$0xff]
    %v361 = vld [vmem:[%s358 + $0x10] sm:$0xff]
    %v362 = vld [vmem:[%s358 + $0x18] sm:$0xff]
    %v363 = vld [vmem:[%s6] sm:$0x1]
    %v364 = vld [vmem:[#allocation2] sm:$0xf]
    %v365 = vld [vmem:[%s1] sm:$0xf]
    %367 = vset.pattern.permute.xlu0 0
    %368 = vperm.xlu0 %367, %v365
    %v369 = vpop.permute.xlu0 %368
    %v371 = vmul.f32 %v364, %v369
    %v372 = vld [vmem:[#allocation3] sm:$0xf]
    %v374 = vsel %vm118, %v371, 0
    %376 = vmatpush.msra.mxu0 0.0
    %377 = vmatpush.msra.mxu0 0.0
    %378 = vmatpush.msra.mxu0 0.0
    %379 = vmatpush.msra.mxu0 0.0
    %380 = vmatpush.msra.mxu0 0.0
    %381 = vmatpush.msra.mxu0 0.0
    %382 = vmatpush.msra.mxu0 0.0
    %383 = vmatpush.msra.mxu0 0.0
    %384 = vmatpush.msra.mxu0 0.0
    %385 = vmatpush.msra.mxu0 0.0
    %386 = vmatpush.msra.mxu0 0.0
    %387 = vmatpush.msra.mxu0 0.0
    %388 = vmatpush.msra.mxu0 %v352
    %389 = vmatpush.msra.mxu0 %v351
    %390 = vmatpush.msra.mxu0 %v350
    %391 = vmatpush.msra.mxu0 %v349
    %392 = vmatmul.f32.gmra.mxu0 %v374
    %v393 = vpop.f32.mrf.mxu0
    %v394 = vadd.f32 0.0, %v393
    %395 = vdwg.mxu0
    %v396 = vadd.f32 %v372, %v394
    %v397 = vxor.u32 %v396, 2147483648
    %v398 = vmul.f32 %v397, 1.442695
    %v399 = vpow.pop %v398
    %v400 = vadd.f32 %v399, 1.0
    %v401 = vrcp.pop %v400
    %v402 = vmul.f32 %v400, %v401
    %v403 = vsub.f32 1.0, %v402
    %v404 = vmul.f32 %v401, %v403
    %v405 = vadd.f32 %v401, %v404
    %vm406 = vweird.f32 %v400
    %vm407 = vweird.f32 %v401
    %vm408 = vmor %vm406, %vm407
    %v409 = vsel %vm408, %v401, %v405
    %v410 = vand.u32 2147483647, %v400
    %vm411 = vcmp.eq.f32.partialorder %v410, 8.507059e+37
    %v412 = vand.u32 %v400, 2147483648
    %v413 = vor.u32 1.1754944e-38, %v412
    %v414 = vsel %vm411, %v413, %v409
    %v415 = vmul.f32 1.0, %v414
    %v416 = vld [vmem:[#allocation4] sm:$0xf]
    %417 = vmatpush.msra.mxu0 0.0
    %418 = vmatpush.msra.mxu0 0.0
    %419 = vmatpush.msra.mxu0 0.0
    %420 = vmatpush.msra.mxu0 0.0
    %421 = vmatpush.msra.mxu0 0.0
    %422 = vmatpush.msra.mxu0 0.0
    %423 = vmatpush.msra.mxu0 0.0
    %424 = vmatpush.msra.mxu0 0.0
    %425 = vmatpush.msra.mxu0 0.0
    %426 = vmatpush.msra.mxu0 0.0
    %427 = vmatpush.msra.mxu0 0.0
    %428 = vmatpush.msra.mxu0 0.0
    %429 = vmatpush.msra.mxu0 %v357
    %430 = vmatpush.msra.mxu0 %v356
    %431 = vmatpush.msra.mxu0 %v355
    %432 = vmatpush.msra.mxu0 %v354
    %433 = vmatmul.f32.gmra.mxu0 %v374
    %v434 = vpop.f32.mrf.mxu0
    %v435 = vadd.f32 0.0, %v434
    %436 = vdwg.mxu0
    %v437 = vadd.f32 %v416, %v435
    %v438 = vxor.u32 %v437, 2147483648
    %v439 = vmul.f32 %v438, 1.442695
    %v440 = vpow.pop %v439
    %v441 = vadd.f32 %v440, 1.0
    %v442 = vrcp.pop %v441
    %v443 = vmul.f32 %v441, %v442
    %v444 = vsub.f32 1.0, %v443
    %v445 = vmul.f32 %v442, %v444
    %v446 = vadd.f32 %v442, %v445
    %vm447 = vweird.f32 %v441
    %vm448 = vweird.f32 %v442
    %vm449 = vmor %vm447, %vm448
    %v450 = vsel %vm449, %v442, %v446
    %v451 = vand.u32 2147483647, %v441
    %vm452 = vcmp.eq.f32.partialorder %v451, 8.507059e+37
    %v453 = vand.u32 %v441, 2147483648
    %v454 = vor.u32 1.1754944e-38, %v453
    %v455 = vsel %vm452, %v454, %v450
    %v456 = vmul.f32 1.0, %v455
    %v457 = vld [vmem:[#allocation5] sm:$0xf]
    %v459 = vperm.slane %v363, 0
    %461 = vmatpush.msra.mxu0 0.0
    %462 = vmatpush.msra.mxu0 0.0
    %463 = vmatpush.msra.mxu0 0.0
    %464 = vmatpush.msra.mxu0 0.0
    %465 = vmatpush.msra.mxu0 0.0
    %466 = vmatpush.msra.mxu0 0.0
    %467 = vmatpush.msra.mxu0 0.0
    %468 = vmatpush.msra.mxu0 0.0
    %469 = vmatpush.msra.mxu0 0.0
    %470 = vmatpush.msra.mxu0 0.0
    %471 = vmatpush.msra.mxu0 0.0
    %472 = vmatpush.msra.mxu0 0.0
    %473 = vmatpush.msra.mxu0 %v362
    %474 = vmatpush.msra.mxu0 %v361
    %475 = vmatpush.msra.mxu0 %v360
    %476 = vmatpush.msra.mxu0 %v359
    %477 = vmatmul.f32.gmra.mxu0 %v374
    %v478 = vpop.f32.mrf.mxu0
    %v479 = vadd.f32 %v459, %v478
    %480 = vdwg.mxu0
    %v481 = vmul.f32 %v415, %v479
    %v482 = vadd.f32 %v457, %v481
    %v483 = vtanh.pop %v482
    %v484 = vsub.f32 1.0, %v456
    %v485 = vmul.f32 %v484, %v483
    %v486 = vmul.f32 %v456, %v371
    %v487 = vadd.f32 %v485, %v486
    %488 = vst.msk [vmem:[#allocation11] sm:$0xf] %vm168, %v487
    %s489 = scalar_lea.vmem %s1, 4
    %v490 = vld [vmem:[%s489] sm:$0xf]
    %492 = vset.pattern.permute.xlu0 0
    %493 = vperm.xlu0 %492, %v490
    %v494 = vpop.permute.xlu0 %493
    %v496 = vmul.f32 %v487, %v494
    %s497 = scalar_lea.vmem [#allocation3], 4
    %v498 = vld [vmem:[%s497] sm:$0xf]
    %v500 = vsel %vm118, %v496, 0
    %502 = vmatpush.msra.mxu0 0.0
    %503 = vmatpush.msra.mxu0 0.0
    %504 = vmatpush.msra.mxu0 0.0
    %505 = vmatpush.msra.mxu0 0.0
    %506 = vmatpush.msra.mxu0 0.0
    %507 = vmatpush.msra.mxu0 0.0
    %508 = vmatpush.msra.mxu0 0.0
    %509 = vmatpush.msra.mxu0 0.0
    %510 = vmatpush.msra.mxu0 0.0
    %511 = vmatpush.msra.mxu0 0.0
    %512 = vmatpush.msra.mxu0 0.0
    %513 = vmatpush.msra.mxu0 0.0
    %514 = vmatpush.msra.mxu0 %v352
    %515 = vmatpush.msra.mxu0 %v351
    %516 = vmatpush.msra.mxu0 %v350
    %517 = vmatpush.msra.mxu0 %v349
    %518 = vmatmul.f32.gmra.mxu0 %v500
    %v519 = vpop.f32.mrf.mxu0
    %v520 = vadd.f32 0.0, %v519
    %521 = vdwg.mxu0
    %v522 = vadd.f32 %v498, %v520
    %v523 = vxor.u32 %v522, 2147483648
    %v524 = vmul.f32 %v523, 1.442695
    %v525 = vpow.pop %v524
    %v526 = vadd.f32 %v525, 1.0
    %v527 = vrcp.pop %v526
    %v528 = vmul.f32 %v526, %v527
    %v529 = vsub.f32 1.0, %v528
    %v530 = vmul.f32 %v527, %v529
    %v531 = vadd.f32 %v527, %v530
    %vm532 = vweird.f32 %v526
    %vm533 = vweird.f32 %v527
    %vm534 = vmor %vm532, %vm533
    %v535 = vsel %vm534, %v527, %v531
    %v536 = vand.u32 2147483647, %v526
    %vm537 = vcmp.eq.f32.partialorder %v536, 8.507059e+37
    %v538 = vand.u32 %v526, 2147483648
    %v539 = vor.u32 1.1754944e-38, %v538
    %v540 = vsel %vm537, %v539, %v535
    %v541 = vmul.f32 1.0, %v540
    %s542 = scalar_lea.vmem [#allocation4], 4
    %v543 = vld [vmem:[%s542] sm:$0xf]
    %544 = vmatpush.msra.mxu0 0.0
    %545 = vmatpush.msra.mxu0 0.0
    %546 = vmatpush.msra.mxu0 0.0
    %547 = vmatpush.msra.mxu0 0.0
    %548 = vmatpush.msra.mxu0 0.0
    %549 = vmatpush.msra.mxu0 0.0
    %550 = vmatpush.msra.mxu0 0.0
    %551 = vmatpush.msra.mxu0 0.0
    %552 = vmatpush.msra.mxu0 0.0
    %553 = vmatpush.msra.mxu0 0.0
    %554 = vmatpush.msra.mxu0 0.0
    %555 = vmatpush.msra.mxu0 0.0
    %556 = vmatpush.msra.mxu0 %v357
    %557 = vmatpush.msra.mxu0 %v356
    %558 = vmatpush.msra.mxu0 %v355
    %559 = vmatpush.msra.mxu0 %v354
    %560 = vmatmul.f32.gmra.mxu0 %v500
    %v561 = vpop.f32.mrf.mxu0
    %v562 = vadd.f32 0.0, %v561
    %563 = vdwg.mxu0
    %v564 = vadd.f32 %v543, %v562
    %v565 = vxor.u32 %v564, 2147483648
    %v566 = vmul.f32 %v565, 1.442695
    %v567 = vpow.pop %v566
    %v568 = vadd.f32 %v567, 1.0
    %v569 = vrcp.pop %v568
    %v570 = vmul.f32 %v568, %v569
    %v571 = vsub.f32 1.0, %v570
    %v572 = vmul.f32 %v569, %v571
    %v573 = vadd.f32 %v569, %v572
    %vm574 = vweird.f32 %v568
    %vm575 = vweird.f32 %v569
    %vm576 = vmor %vm574, %vm575
    %v577 = vsel %vm576, %v569, %v573
    %v578 = vand.u32 2147483647, %v568
    %vm579 = vcmp.eq.f32.partialorder %v578, 8.507059e+37
    %v580 = vand.u32 %v568, 2147483648
    %v581 = vor.u32 1.1754944e-38, %v580
    %v582 = vsel %vm579, %v581, %v577
    %v583 = vmul.f32 1.0, %v582
    %s584 = scalar_lea.vmem [#allocation5], 4
    %v585 = vld [vmem:[%s584] sm:$0xf]
    %586 = vmatpush.msra.mxu0 0.0
    %587 = vmatpush.msra.mxu0 0.0
    %588 = vmatpush.msra.mxu0 0.0
    %589 = vmatpush.msra.mxu0 0.0
    %590 = vmatpush.msra.mxu0 0.0
    %591 = vmatpush.msra.mxu0 0.0
    %592 = vmatpush.msra.mxu0 0.0
    %593 = vmatpush.msra.mxu0 0.0
    %594 = vmatpush.msra.mxu0 0.0
    %595 = vmatpush.msra.mxu0 0.0
    %596 = vmatpush.msra.mxu0 0.0
    %597 = vmatpush.msra.mxu0 0.0
    %598 = vmatpush.msra.mxu0 %v362
    %599 = vmatpush.msra.mxu0 %v361
    %600 = vmatpush.msra.mxu0 %v360
    %601 = vmatpush.msra.mxu0 %v359
    %602 = vmatmul.f32.gmra.mxu0 %v500
    %v603 = vpop.f32.mrf.mxu0
    %v604 = vadd.f32 %v459, %v603
    %605 = vdwg.mxu0
    %v606 = vmul.f32 %v541, %v604
    %v607 = vadd.f32 %v585, %v606
    %v608 = vtanh.pop %v607
    %v609 = vsub.f32 1.0, %v583
    %v610 = vmul.f32 %v609, %v608
    %v611 = vmul.f32 %v583, %v496
    %v612 = vadd.f32 %v610, %v611
    %s613 = scalar_lea.vmem [#allocation11], 4
    %614 = vst.msk [vmem:[%s613] sm:$0xf] %vm168, %v612
    %s615 = scalar_lea.vmem %s1, 8
    %v616 = vld [vmem:[%s615] sm:$0xf]
    %618 = vset.pattern.permute.xlu0 0
    %619 = vperm.xlu0 %618, %v616
    %v620 = vpop.permute.xlu0 %619
    %v622 = vmul.f32 %v612, %v620
    %s623 = scalar_lea.vmem [#allocation3], 8
    %v624 = vld [vmem:[%s623] sm:$0xf]
    %v626 = vsel %vm118, %v622, 0
    %628 = vmatpush.msra.mxu0 0.0
    %629 = vmatpush.msra.mxu0 0.0
    %630 = vmatpush.msra.mxu0 0.0
    %631 = vmatpush.msra.mxu0 0.0
    %632 = vmatpush.msra.mxu0 0.0
    %633 = vmatpush.msra.mxu0 0.0
    %634 = vmatpush.msra.mxu0 0.0
    %635 = vmatpush.msra.mxu0 0.0
    %636 = vmatpush.msra.mxu0 0.0
    %637 = vmatpush.msra.mxu0 0.0
    %638 = vmatpush.msra.mxu0 0.0
    %639 = vmatpush.msra.mxu0 0.0
    %640 = vmatpush.msra.mxu0 %v352
    %641 = vmatpush.msra.mxu0 %v351
    %642 = vmatpush.msra.mxu0 %v350
    %643 = vmatpush.msra.mxu0 %v349
    %644 = vmatmul.f32.gmra.mxu0 %v626
    %v645 = vpop.f32.mrf.mxu0
    %v646 = vadd.f32 0.0, %v645
    %647 = vdwg.mxu0
    %v648 = vadd.f32 %v624, %v646
    %v649 = vxor.u32 %v648, 2147483648
    %v650 = vmul.f32 %v649, 1.442695
    %v651 = vpow.pop %v650
    %v652 = vadd.f32 %v651, 1.0
    %v653 = vrcp.pop %v652
    %v654 = vmul.f32 %v652, %v653
    %v655 = vsub.f32 1.0, %v654
    %v656 = vmul.f32 %v653, %v655
    %v657 = vadd.f32 %v653, %v656
    %vm658 = vweird.f32 %v652
    %vm659 = vweird.f32 %v653
    %vm660 = vmor %vm658, %vm659
    %v661 = vsel %vm660, %v653, %v657
    %v662 = vand.u32 2147483647, %v652
    %vm663 = vcmp.eq.f32.partialorder %v662, 8.507059e+37
    %v664 = vand.u32 %v652, 2147483648
    %v665 = vor.u32 1.1754944e-38, %v664
    %v666 = vsel %vm663, %v665, %v661
    %v667 = vmul.f32 1.0, %v666
    %s668 = scalar_lea.vmem [#allocation4], 8
    %v669 = vld [vmem:[%s668] sm:$0xf]
    %670 = vmatpush.msra.mxu0 0.0
    %671 = vmatpush.msra.mxu0 0.0
    %672 = vmatpush.msra.mxu0 0.0
    %673 = vmatpush.msra.mxu0 0.0
    %674 = vmatpush.msra.mxu0 0.0
    %675 = vmatpush.msra.mxu0 0.0
    %676 = vmatpush.msra.mxu0 0.0
    %677 = vmatpush.msra.mxu0 0.0
    %678 = vmatpush.msra.mxu0 0.0
    %679 = vmatpush.msra.mxu0 0.0
    %680 = vmatpush.msra.mxu0 0.0
    %681 = vmatpush.msra.mxu0 0.0
    %682 = vmatpush.msra.mxu0 %v357
    %683 = vmatpush.msra.mxu0 %v356
    %684 = vmatpush.msra.mxu0 %v355
    %685 = vmatpush.msra.mxu0 %v354
    %686 = vmatmul.f32.gmra.mxu0 %v626
    %v687 = vpop.f32.mrf.mxu0
    %v688 = vadd.f32 0.0, %v687
    %689 = vdwg.mxu0
    %v690 = vadd.f32 %v669, %v688
    %v691 = vxor.u32 %v690, 2147483648
    %v692 = vmul.f32 %v691, 1.442695
    %v693 = vpow.pop %v692
    %v694 = vadd.f32 %v693, 1.0
    %v695 = vrcp.pop %v694
    %v696 = vmul.f32 %v694, %v695
    %v697 = vsub.f32 1.0, %v696
    %v698 = vmul.f32 %v695, %v697
    %v699 = vadd.f32 %v695, %v698
    %vm700 = vweird.f32 %v694
    %vm701 = vweird.f32 %v695
    %vm702 = vmor %vm700, %vm701
    %v703 = vsel %vm702, %v695, %v699
    %v704 = vand.u32 2147483647, %v694
    %vm705 = vcmp.eq.f32.partialorder %v704, 8.507059e+37
    %v706 = vand.u32 %v694, 2147483648
    %v707 = vor.u32 1.1754944e-38, %v706
    %v708 = vsel %vm705, %v707, %v703
    %v709 = vmul.f32 1.0, %v708
    %s710 = scalar_lea.vmem [#allocation5], 8
    %v711 = vld [vmem:[%s710] sm:$0xf]
    %712 = vmatpush.msra.mxu0 0.0
    %713 = vmatpush.msra.mxu0 0.0
    %714 = vmatpush.msra.mxu0 0.0
    %715 = vmatpush.msra.mxu0 0.0
    %716 = vmatpush.msra.mxu0 0.0
    %717 = vmatpush.msra.mxu0 0.0
    %718 = vmatpush.msra.mxu0 0.0
    %719 = vmatpush.msra.mxu0 0.0
    %720 = vmatpush.msra.mxu0 0.0
    %721 = vmatpush.msra.mxu0 0.0
    %722 = vmatpush.msra.mxu0 0.0
    %723 = vmatpush.msra.mxu0 0.0
    %724 = vmatpush.msra.mxu0 %v362
    %725 = vmatpush.msra.mxu0 %v361
    %726 = vmatpush.msra.mxu0 %v360
    %727 = vmatpush.msra.mxu0 %v359
    %728 = vmatmul.f32.gmra.mxu0 %v626
    %v729 = vpop.f32.mrf.mxu0
    %v730 = vadd.f32 %v459, %v729
    %731 = vdwg.mxu0
    %v732 = vmul.f32 %v667, %v730
    %v733 = vadd.f32 %v711, %v732
    %v734 = vtanh.pop %v733
    %v735 = vsub.f32 1.0, %v709
    %v736 = vmul.f32 %v735, %v734
    %v737 = vmul.f32 %v709, %v622
    %v738 = vadd.f32 %v736, %v737
    %s739 = scalar_lea.vmem [#allocation11], 8
    %740 = vst.msk [vmem:[%s739] sm:$0xf] %vm168, %v738
    %s741 = scalar_lea.vmem %s1, 12
    %v742 = vld [vmem:[%s741] sm:$0xf]
    %744 = vset.pattern.permute.xlu0 0
    %745 = vperm.xlu0 %744, %v742
    %v746 = vpop.permute.xlu0 %745
    %v748 = vmul.f32 %v738, %v746
    %s749 = scalar_lea.vmem [#allocation3], 12
    %v750 = vld [vmem:[%s749] sm:$0xf]
    %v752 = vsel %vm118, %v748, 0
    %754 = vmatpush.msra.mxu0 0.0
    %755 = vmatpush.msra.mxu0 0.0
    %756 = vmatpush.msra.mxu0 0.0
    %757 = vmatpush.msra.mxu0 0.0
    %758 = vmatpush.msra.mxu0 0.0
    %759 = vmatpush.msra.mxu0 0.0
    %760 = vmatpush.msra.mxu0 0.0
    %761 = vmatpush.msra.mxu0 0.0
    %762 = vmatpush.msra.mxu0 0.0
    %763 = vmatpush.msra.mxu0 0.0
    %764 = vmatpush.msra.mxu0 0.0
    %765 = vmatpush.msra.mxu0 0.0
    %766 = vmatpush.msra.mxu0 %v352
    %767 = vmatpush.msra.mxu0 %v351
    %768 = vmatpush.msra.mxu0 %v350
    %769 = vmatpush.msra.mxu0 %v349
    %770 = vmatmul.f32.gmra.mxu0 %v752
    %v771 = vpop.f32.mrf.mxu0
    %v772 = vadd.f32 0.0, %v771
    %773 = vdwg.mxu0
    %v774 = vadd.f32 %v750, %v772
    %v775 = vxor.u32 %v774, 2147483648
    %v776 = vmul.f32 %v775, 1.442695
    %v777 = vpow.pop %v776
    %v778 = vadd.f32 %v777, 1.0
    %v779 = vrcp.pop %v778
    %v780 = vmul.f32 %v778, %v779
    %v781 = vsub.f32 1.0, %v780
    %v782 = vmul.f32 %v779, %v781
    %v783 = vadd.f32 %v779, %v782
    %vm784 = vweird.f32 %v778
    %vm785 = vweird.f32 %v779
    %vm786 = vmor %vm784, %vm785
    %v787 = vsel %vm786, %v779, %v783
    %v788 = vand.u32 2147483647, %v778
    %vm789 = vcmp.eq.f32.partialorder %v788, 8.507059e+37
    %v790 = vand.u32 %v778, 2147483648
    %v791 = vor.u32 1.1754944e-38, %v790
    %v792 = vsel %vm789, %v791, %v787
    %v793 = vmul.f32 1.0, %v792
    %s794 = scalar_lea.vmem [#allocation4], 12
    %v795 = vld [vmem:[%s794] sm:$0xf]
    %796 = vmatpush.msra.mxu0 0.0
    %797 = vmatpush.msra.mxu0 0.0
    %798 = vmatpush.msra.mxu0 0.0
    %799 = vmatpush.msra.mxu0 0.0
    %800 = vmatpush.msra.mxu0 0.0
    %801 = vmatpush.msra.mxu0 0.0
    %802 = vmatpush.msra.mxu0 0.0
    %803 = vmatpush.msra.mxu0 0.0
    %804 = vmatpush.msra.mxu0 0.0
    %805 = vmatpush.msra.mxu0 0.0
    %806 = vmatpush.msra.mxu0 0.0
    %807 = vmatpush.msra.mxu0 0.0
    %808 = vmatpush.msra.mxu0 %v357
    %809 = vmatpush.msra.mxu0 %v356
    %810 = vmatpush.msra.mxu0 %v355
    %811 = vmatpush.msra.mxu0 %v354
    %812 = vmatmul.f32.gmra.mxu0 %v752
    %v813 = vpop.f32.mrf.mxu0
    %v814 = vadd.f32 0.0, %v813
    %815 = vdwg.mxu0
    %v816 = vadd.f32 %v795, %v814
    %v817 = vxor.u32 %v816, 2147483648
    %v818 = vmul.f32 %v817, 1.442695
    %v819 = vpow.pop %v818
    %v820 = vadd.f32 %v819, 1.0
    %v821 = vrcp.pop %v820
    %v822 = vmul.f32 %v820, %v821
    %v823 = vsub.f32 1.0, %v822
    %v824 = vmul.f32 %v821, %v823
    %v825 = vadd.f32 %v821, %v824
    %vm826 = vweird.f32 %v820
    %vm827 = vweird.f32 %v821
    %vm828 = vmor %vm826, %vm827
    %v829 = vsel %vm828, %v821, %v825
    %v830 = vand.u32 2147483647, %v820
    %vm831 = vcmp.eq.f32.partialorder %v830, 8.507059e+37
    %v832 = vand.u32 %v820, 2147483648
    %v833 = vor.u32 1.1754944e-38, %v832
    %v834 = vsel %vm831, %v833, %v829
    %v835 = vmul.f32 1.0, %v834
    %s836 = scalar_lea.vmem [#allocation5], 12
    %v837 = vld [vmem:[%s836] sm:$0xf]
    %838 = vmatpush.msra.mxu0 0.0
    %839 = vmatpush.msra.mxu0 0.0
    %840 = vmatpush.msra.mxu0 0.0
    %841 = vmatpush.msra.mxu0 0.0
    %842 = vmatpush.msra.mxu0 0.0
    %843 = vmatpush.msra.mxu0 0.0
    %844 = vmatpush.msra.mxu0 0.0
    %845 = vmatpush.msra.mxu0 0.0
    %846 = vmatpush.msra.mxu0 0.0
    %847 = vmatpush.msra.mxu0 0.0
    %848 = vmatpush.msra.mxu0 0.0
    %849 = vmatpush.msra.mxu0 0.0
    %850 = vmatpush.msra.mxu0 %v362
    %851 = vmatpush.msra.mxu0 %v361
    %852 = vmatpush.msra.mxu0 %v360
    %853 = vmatpush.msra.mxu0 %v359
    %854 = vmatmul.f32.gmra.mxu0 %v752
    %v855 = vpop.f32.mrf.mxu0
    %v856 = vadd.f32 %v459, %v855
    %857 = vdwg.mxu0
    %v858 = vmul.f32 %v793, %v856
    %v859 = vadd.f32 %v837, %v858
    %v860 = vtanh.pop %v859
    %v861 = vsub.f32 1.0, %v835
    %v862 = vmul.f32 %v861, %v860
    %v863 = vmul.f32 %v835, %v748
    %v864 = vadd.f32 %v862, %v863
    %s865 = scalar_lea.vmem [#allocation11], 12
    %866 = vst.msk [vmem:[%s865] sm:$0xf] %vm168, %v864
    %s867 = scalar_lea.vmem %s1, 16
    %v868 = vld [vmem:[%s867] sm:$0xf]
    %870 = vset.pattern.permute.xlu0 0
    %871 = vperm.xlu0 %870, %v868
    %v872 = vpop.permute.xlu0 %871
    %v874 = vmul.f32 %v864, %v872
    %s875 = scalar_lea.vmem [#allocation3], 16
    %v876 = vld [vmem:[%s875] sm:$0xf]
    %v878 = vsel %vm118, %v874, 0
    %880 = vmatpush.msra.mxu0 0.0
    %881 = vmatpush.msra.mxu0 0.0
    %882 = vmatpush.msra.mxu0 0.0
    %883 = vmatpush.msra.mxu0 0.0
    %884 = vmatpush.msra.mxu0 0.0
    %885 = vmatpush.msra.mxu0 0.0
    %886 = vmatpush.msra.mxu0 0.0
    %887 = vmatpush.msra.mxu0 0.0
    %888 = vmatpush.msra.mxu0 0.0
    %889 = vmatpush.msra.mxu0 0.0
    %890 = vmatpush.msra.mxu0 0.0
    %891 = vmatpush.msra.mxu0 0.0
    %892 = vmatpush.msra.mxu0 %v352
    %893 = vmatpush.msra.mxu0 %v351
    %894 = vmatpush.msra.mxu0 %v350
    %895 = vmatpush.msra.mxu0 %v349
    %896 = vmatmul.f32.gmra.mxu0 %v878
    %v897 = vpop.f32.mrf.mxu0
    %v898 = vadd.f32 0.0, %v897
    %899 = vdwg.mxu0
    %v900 = vadd.f32 %v876, %v898
    %v901 = vxor.u32 %v900, 2147483648
    %v902 = vmul.f32 %v901, 1.442695
    %v903 = vpow.pop %v902
    %v904 = vadd.f32 %v903, 1.0
    %v905 = vrcp.pop %v904
    %v906 = vmul.f32 %v904, %v905
    %v907 = vsub.f32 1.0, %v906
    %v908 = vmul.f32 %v905, %v907
    %v909 = vadd.f32 %v905, %v908
    %vm910 = vweird.f32 %v904
    %vm911 = vweird.f32 %v905
    %vm912 = vmor %vm910, %vm911
    %v913 = vsel %vm912, %v905, %v909
    %v914 = vand.u32 2147483647, %v904
    %vm915 = vcmp.eq.f32.partialorder %v914, 8.507059e+37
    %v916 = vand.u32 %v904, 2147483648
    %v917 = vor.u32 1.1754944e-38, %v916
    %v918 = vsel %vm915, %v917, %v913
    %v919 = vmul.f32 1.0, %v918
    %s920 = scalar_lea.vmem [#allocation4], 16
    %v921 = vld [vmem:[%s920] sm:$0xf]
    %922 = vmatpush.msra.mxu0 0.0
    %923 = vmatpush.msra.mxu0 0.0
    %924 = vmatpush.msra.mxu0 0.0
    %925 = vmatpush.msra.mxu0 0.0
    %926 = vmatpush.msra.mxu0 0.0
    %927 = vmatpush.msra.mxu0 0.0
    %928 = vmatpush.msra.mxu0 0.0
    %929 = vmatpush.msra.mxu0 0.0
    %930 = vmatpush.msra.mxu0 0.0
    %931 = vmatpush.msra.mxu0 0.0
    %932 = vmatpush.msra.mxu0 0.0
    %933 = vmatpush.msra.mxu0 0.0
    %934 = vmatpush.msra.mxu0 %v357
    %935 = vmatpush.msra.mxu0 %v356
    %936 = vmatpush.msra.mxu0 %v355
    %937 = vmatpush.msra.mxu0 %v354
    %938 = vmatmul.f32.gmra.mxu0 %v878
    %v939 = vpop.f32.mrf.mxu0
    %v940 = vadd.f32 0.0, %v939
    %941 = vdwg.mxu0
    %v942 = vadd.f32 %v921, %v940
    %v943 = vxor.u32 %v942, 2147483648
    %v944 = vmul.f32 %v943, 1.442695
    %v945 = vpow.pop %v944
    %v946 = vadd.f32 %v945, 1.0
    %v947 = vrcp.pop %v946
    %v948 = vmul.f32 %v946, %v947
    %v949 = vsub.f32 1.0, %v948
    %v950 = vmul.f32 %v947, %v949
    %v951 = vadd.f32 %v947, %v950
    %vm952 = vweird.f32 %v946
    %vm953 = vweird.f32 %v947
    %vm954 = vmor %vm952, %vm953
    %v955 = vsel %vm954, %v947, %v951
    %v956 = vand.u32 2147483647, %v946
    %vm957 = vcmp.eq.f32.partialorder %v956, 8.507059e+37
    %v958 = vand.u32 %v946, 2147483648
    %v959 = vor.u32 1.1754944e-38, %v958
    %v960 = vsel %vm957, %v959, %v955
    %v961 = vmul.f32 1.0, %v960
    %s962 = scalar_lea.vmem [#allocation5], 16
    %v963 = vld [vmem:[%s962] sm:$0xf]
    %964 = vmatpush.msra.mxu0 0.0
    %965 = vmatpush.msra.mxu0 0.0
    %966 = vmatpush.msra.mxu0 0.0
    %967 = vmatpush.msra.mxu0 0.0
    %968 = vmatpush.msra.mxu0 0.0
    %969 = vmatpush.msra.mxu0 0.0
    %970 = vmatpush.msra.mxu0 0.0
    %971 = vmatpush.msra.mxu0 0.0
    %972 = vmatpush.msra.mxu0 0.0
    %973 = vmatpush.msra.mxu0 0.0
    %974 = vmatpush.msra.mxu0 0.0
    %975 = vmatpush.msra.mxu0 0.0
    %976 = vmatpush.msra.mxu0 %v362
    %977 = vmatpush.msra.mxu0 %v361
    %978 = vmatpush.msra.mxu0 %v360
    %979 = vmatpush.msra.mxu0 %v359
    %980 = vmatmul.f32.gmra.mxu0 %v878
    %v981 = vpop.f32.mrf.mxu0
    %v982 = vadd.f32 %v459, %v981
    %983 = vdwg.mxu0
    %v984 = vmul.f32 %v919, %v982
    %v985 = vadd.f32 %v963, %v984
    %v986 = vtanh.pop %v985
    %v987 = vsub.f32 1.0, %v961
    %v988 = vmul.f32 %v987, %v986
    %v989 = vmul.f32 %v961, %v874
    %v990 = vadd.f32 %v988, %v989
    %s991 = scalar_lea.vmem [#allocation11], 16
    %992 = vst.msk [vmem:[%s991] sm:$0xf] %vm168, %v990
    %s993 = scalar_lea.vmem %s1, 20
    %v994 = vld [vmem:[%s993] sm:$0xf]
    %996 = vset.pattern.permute.xlu0 0
    %997 = vperm.xlu0 %996, %v994
    %v998 = vpop.permute.xlu0 %997
    %v1000 = vmul.f32 %v990, %v998
    %s1001 = scalar_lea.vmem [#allocation3], 20
    %v1002 = vld [vmem:[%s1001] sm:$0xf]
    %v1004 = vsel %vm118, %v1000, 0
    %1006 = vmatpush.msra.mxu0 0.0
    %1007 = vmatpush.msra.mxu0 0.0
    %1008 = vmatpush.msra.mxu0 0.0
    %1009 = vmatpush.msra.mxu0 0.0
    %1010 = vmatpush.msra.mxu0 0.0
    %1011 = vmatpush.msra.mxu0 0.0
    %1012 = vmatpush.msra.mxu0 0.0
    %1013 = vmatpush.msra.mxu0 0.0
    %1014 = vmatpush.msra.mxu0 0.0
    %1015 = vmatpush.msra.mxu0 0.0
    %1016 = vmatpush.msra.mxu0 0.0
    %1017 = vmatpush.msra.mxu0 0.0
    %1018 = vmatpush.msra.mxu0 %v352
    %1019 = vmatpush.msra.mxu0 %v351
    %1020 = vmatpush.msra.mxu0 %v350
    %1021 = vmatpush.msra.mxu0 %v349
    %1022 = vmatmul.f32.gmra.mxu0 %v1004
    %v1023 = vpop.f32.mrf.mxu0
    %v1024 = vadd.f32 0.0, %v1023
    %1025 = vdwg.mxu0
    %v1026 = vadd.f32 %v1002, %v1024
    %v1027 = vxor.u32 %v1026, 2147483648
    %v1028 = vmul.f32 %v1027, 1.442695
    %v1029 = vpow.pop %v1028
    %v1030 = vadd.f32 %v1029, 1.0
    %v1031 = vrcp.pop %v1030
    %v1032 = vmul.f32 %v1030, %v1031
    %v1033 = vsub.f32 1.0, %v1032
    %v1034 = vmul.f32 %v1031, %v1033
    %v1035 = vadd.f32 %v1031, %v1034
    %vm1036 = vweird.f32 %v1030
    %vm1037 = vweird.f32 %v1031
    %vm1038 = vmor %vm1036, %vm1037
    %v1039 = vsel %vm1038, %v1031, %v1035
    %v1040 = vand.u32 2147483647, %v1030
    %vm1041 = vcmp.eq.f32.partialorder %v1040, 8.507059e+37
    %v1042 = vand.u32 %v1030, 2147483648
    %v1043 = vor.u32 1.1754944e-38, %v1042
    %v1044 = vsel %vm1041, %v1043, %v1039
    %v1045 = vmul.f32 1.0, %v1044
    %s1046 = scalar_lea.vmem [#allocation4], 20
    %v1047 = vld [vmem:[%s1046] sm:$0xf]
    %1048 = vmatpush.msra.mxu0 0.0
    %1049 = vmatpush.msra.mxu0 0.0
    %1050 = vmatpush.msra.mxu0 0.0
    %1051 = vmatpush.msra.mxu0 0.0
    %1052 = vmatpush.msra.mxu0 0.0
    %1053 = vmatpush.msra.mxu0 0.0
    %1054 = vmatpush.msra.mxu0 0.0
    %1055 = vmatpush.msra.mxu0 0.0
    %1056 = vmatpush.msra.mxu0 0.0
    %1057 = vmatpush.msra.mxu0 0.0
    %1058 = vmatpush.msra.mxu0 0.0
    %1059 = vmatpush.msra.mxu0 0.0
    %1060 = vmatpush.msra.mxu0 %v357
    %1061 = vmatpush.msra.mxu0 %v356
    %1062 = vmatpush.msra.mxu0 %v355
    %1063 = vmatpush.msra.mxu0 %v354
    %1064 = vmatmul.f32.gmra.mxu0 %v1004
    %v1065 = vpop.f32.mrf.mxu0
    %v1066 = vadd.f32 0.0, %v1065
    %1067 = vdwg.mxu0
    %v1068 = vadd.f32 %v1047, %v1066
    %v1069 = vxor.u32 %v1068, 2147483648
    %v1070 = vmul.f32 %v1069, 1.442695
    %v1071 = vpow.pop %v1070
    %v1072 = vadd.f32 %v1071, 1.0
    %v1073 = vrcp.pop %v1072
    %v1074 = vmul.f32 %v1072, %v1073
    %v1075 = vsub.f32 1.0, %v1074
    %v1076 = vmul.f32 %v1073, %v1075
    %v1077 = vadd.f32 %v1073, %v1076
    %vm1078 = vweird.f32 %v1072
    %vm1079 = vweird.f32 %v1073
    %vm1080 = vmor %vm1078, %vm1079
    %v1081 = vsel %vm1080, %v1073, %v1077
    %v1082 = vand.u32 2147483647, %v1072
    %vm1083 = vcmp.eq.f32.partialorder %v1082, 8.507059e+37
    %v1084 = vand.u32 %v1072, 2147483648
    %v1085 = vor.u32 1.1754944e-38, %v1084
    %v1086 = vsel %vm1083, %v1085, %v1081
    %v1087 = vmul.f32 1.0, %v1086
    %s1088 = scalar_lea.vmem [#allocation5], 20
    %v1089 = vld [vmem:[%s1088] sm:$0xf]
    %1090 = vmatpush.msra.mxu0 0.0
    %1091 = vmatpush.msra.mxu0 0.0
    %1092 = vmatpush.msra.mxu0 0.0
    %1093 = vmatpush.msra.mxu0 0.0
    %1094 = vmatpush.msra.mxu0 0.0
    %1095 = vmatpush.msra.mxu0 0.0
    %1096 = vmatpush.msra.mxu0 0.0
    %1097 = vmatpush.msra.mxu0 0.0
    %1098 = vmatpush.msra.mxu0 0.0
    %1099 = vmatpush.msra.mxu0 0.0
    %1100 = vmatpush.msra.mxu0 0.0
    %1101 = vmatpush.msra.mxu0 0.0
    %1102 = vmatpush.msra.mxu0 %v362
    %1103 = vmatpush.msra.mxu0 %v361
    %1104 = vmatpush.msra.mxu0 %v360
    %1105 = vmatpush.msra.mxu0 %v359
    %1106 = vmatmul.f32.gmra.mxu0 %v1004
    %v1107 = vpop.f32.mrf.mxu0
    %v1108 = vadd.f32 %v459, %v1107
    %1109 = vdwg.mxu0
    %v1110 = vmul.f32 %v1045, %v1108
    %v1111 = vadd.f32 %v1089, %v1110
    %v1112 = vtanh.pop %v1111
    %v1113 = vsub.f32 1.0, %v1087
    %v1114 = vmul.f32 %v1113, %v1112
    %v1115 = vmul.f32 %v1087, %v1000
    %v1116 = vadd.f32 %v1114, %v1115
    %s1117 = scalar_lea.vmem [#allocation11], 20
    %1118 = vst.msk [vmem:[%s1117] sm:$0xf] %vm168, %v1116
    %s1119 = scalar_lea.vmem %s1, 24
    %v1120 = vld [vmem:[%s1119] sm:$0xf]
    %1122 = vset.pattern.permute.xlu0 0
    %1123 = vperm.xlu0 %1122, %v1120
    %v1124 = vpop.permute.xlu0 %1123
    %v1126 = vmul.f32 %v1116, %v1124
    %s1127 = scalar_lea.vmem [#allocation3], 24
    %v1128 = vld [vmem:[%s1127] sm:$0xf]
    %v1130 = vsel %vm118, %v1126, 0
    %1132 = vmatpush.msra.mxu0 0.0
    %1133 = vmatpush.msra.mxu0 0.0
    %1134 = vmatpush.msra.mxu0 0.0
    %1135 = vmatpush.msra.mxu0 0.0
    %1136 = vmatpush.msra.mxu0 0.0
    %1137 = vmatpush.msra.mxu0 0.0
    %1138 = vmatpush.msra.mxu0 0.0
    %1139 = vmatpush.msra.mxu0 0.0
    %1140 = vmatpush.msra.mxu0 0.0
    %1141 = vmatpush.msra.mxu0 0.0
    %1142 = vmatpush.msra.mxu0 0.0
    %1143 = vmatpush.msra.mxu0 0.0
    %1144 = vmatpush.msra.mxu0 %v352
    %1145 = vmatpush.msra.mxu0 %v351
    %1146 = vmatpush.msra.mxu0 %v350
    %1147 = vmatpush.msra.mxu0 %v349
    %1148 = vmatmul.f32.gmra.mxu0 %v1130
    %v1149 = vpop.f32.mrf.mxu0
    %v1150 = vadd.f32 0.0, %v1149
    %1151 = vdwg.mxu0
    %v1152 = vadd.f32 %v1128, %v1150
    %v1153 = vxor.u32 %v1152, 2147483648
    %v1154 = vmul.f32 %v1153, 1.442695
    %v1155 = vpow.pop %v1154
    %v1156 = vadd.f32 %v1155, 1.0
    %v1157 = vrcp.pop %v1156
    %v1158 = vmul.f32 %v1156, %v1157
    %v1159 = vsub.f32 1.0, %v1158
    %v1160 = vmul.f32 %v1157, %v1159
    %v1161 = vadd.f32 %v1157, %v1160
    %vm1162 = vweird.f32 %v1156
    %vm1163 = vweird.f32 %v1157
    %vm1164 = vmor %vm1162, %vm1163
    %v1165 = vsel %vm1164, %v1157, %v1161
    %v1166 = vand.u32 2147483647, %v1156
    %vm1167 = vcmp.eq.f32.partialorder %v1166, 8.507059e+37
    %v1168 = vand.u32 %v1156, 2147483648
    %v1169 = vor.u32 1.1754944e-38, %v1168
    %v1170 = vsel %vm1167, %v1169, %v1165
    %v1171 = vmul.f32 1.0, %v1170
    %s1172 = scalar_lea.vmem [#allocation4], 24
    %v1173 = vld [vmem:[%s1172] sm:$0xf]
    %1174 = vmatpush.msra.mxu0 0.0
    %1175 = vmatpush.msra.mxu0 0.0
    %1176 = vmatpush.msra.mxu0 0.0
    %1177 = vmatpush.msra.mxu0 0.0
    %1178 = vmatpush.msra.mxu0 0.0
    %1179 = vmatpush.msra.mxu0 0.0
    %1180 = vmatpush.msra.mxu0 0.0
    %1181 = vmatpush.msra.mxu0 0.0
    %1182 = vmatpush.msra.mxu0 0.0
    %1183 = vmatpush.msra.mxu0 0.0
    %1184 = vmatpush.msra.mxu0 0.0
    %1185 = vmatpush.msra.mxu0 0.0
    %1186 = vmatpush.msra.mxu0 %v357
    %1187 = vmatpush.msra.mxu0 %v356
    %1188 = vmatpush.msra.mxu0 %v355
    %1189 = vmatpush.msra.mxu0 %v354
    %1190 = vmatmul.f32.gmra.mxu0 %v1130
    %v1191 = vpop.f32.mrf.mxu0
    %v1192 = vadd.f32 0.0, %v1191
    %1193 = vdwg.mxu0
    %v1194 = vadd.f32 %v1173, %v1192
    %v1195 = vxor.u32 %v1194, 2147483648
    %v1196 = vmul.f32 %v1195, 1.442695
    %v1197 = vpow.pop %v1196
    %v1198 = vadd.f32 %v1197, 1.0
    %v1199 = vrcp.pop %v1198
    %v1200 = vmul.f32 %v1198, %v1199
    %v1201 = vsub.f32 1.0, %v1200
    %v1202 = vmul.f32 %v1199, %v1201
    %v1203 = vadd.f32 %v1199, %v1202
    %vm1204 = vweird.f32 %v1198
    %vm1205 = vweird.f32 %v1199
    %vm1206 = vmor %vm1204, %vm1205
    %v1207 = vsel %vm1206, %v1199, %v1203
    %v1208 = vand.u32 2147483647, %v1198
    %vm1209 = vcmp.eq.f32.partialorder %v1208, 8.507059e+37
    %v1210 = vand.u32 %v1198, 2147483648
    %v1211 = vor.u32 1.1754944e-38, %v1210
    %v1212 = vsel %vm1209, %v1211, %v1207
    %v1213 = vmul.f32 1.0, %v1212
    %s1214 = scalar_lea.vmem [#allocation5], 24
    %v1215 = vld [vmem:[%s1214] sm:$0xf]
    %1216 = vmatpush.msra.mxu0 0.0
    %1217 = vmatpush.msra.mxu0 0.0
    %1218 = vmatpush.msra.mxu0 0.0
    %1219 = vmatpush.msra.mxu0 0.0
    %1220 = vmatpush.msra.mxu0 0.0
    %1221 = vmatpush.msra.mxu0 0.0
    %1222 = vmatpush.msra.mxu0 0.0
    %1223 = vmatpush.msra.mxu0 0.0
    %1224 = vmatpush.msra.mxu0 0.0
    %1225 = vmatpush.msra.mxu0 0.0
    %1226 = vmatpush.msra.mxu0 0.0
    %1227 = vmatpush.msra.mxu0 0.0
    %1228 = vmatpush.msra.mxu0 %v362
    %1229 = vmatpush.msra.mxu0 %v361
    %1230 = vmatpush.msra.mxu0 %v360
    %1231 = vmatpush.msra.mxu0 %v359
    %1232 = vmatmul.f32.gmra.mxu0 %v1130
    %v1233 = vpop.f32.mrf.mxu0
    %v1234 = vadd.f32 %v459, %v1233
    %1235 = vdwg.mxu0
    %v1236 = vmul.f32 %v1171, %v1234
    %v1237 = vadd.f32 %v1215, %v1236
    %v1238 = vtanh.pop %v1237
    %v1239 = vsub.f32 1.0, %v1213
    %v1240 = vmul.f32 %v1239, %v1238
    %v1241 = vmul.f32 %v1213, %v1126
    %v1242 = vadd.f32 %v1240, %v1241
    %s1243 = scalar_lea.vmem [#allocation11], 24
    %1244 = vst.msk [vmem:[%s1243] sm:$0xf] %vm168, %v1242
    %s1245 = scalar_lea.vmem %s1, 28
    %v1246 = vld [vmem:[%s1245] sm:$0xf]
    %1248 = vset.pattern.permute.xlu0 0
    %1249 = vperm.xlu0 %1248, %v1246
    %v1250 = vpop.permute.xlu0 %1249
    %v1252 = vmul.f32 %v1242, %v1250
    %s1253 = scalar_lea.vmem [#allocation3], 28
    %v1254 = vld [vmem:[%s1253] sm:$0xf]
    %v1256 = vsel %vm118, %v1252, 0
    %1258 = vmatpush.msra.mxu0 0.0
    %1259 = vmatpush.msra.mxu0 0.0
    %1260 = vmatpush.msra.mxu0 0.0
    %1261 = vmatpush.msra.mxu0 0.0
    %1262 = vmatpush.msra.mxu0 0.0
    %1263 = vmatpush.msra.mxu0 0.0
    %1264 = vmatpush.msra.mxu0 0.0
    %1265 = vmatpush.msra.mxu0 0.0
    %1266 = vmatpush.msra.mxu0 0.0
    %1267 = vmatpush.msra.mxu0 0.0
    %1268 = vmatpush.msra.mxu0 0.0
    %1269 = vmatpush.msra.mxu0 0.0
    %1270 = vmatpush.msra.mxu0 %v352
    %1271 = vmatpush.msra.mxu0 %v351
    %1272 = vmatpush.msra.mxu0 %v350
    %1273 = vmatpush.msra.mxu0 %v349
    %1274 = vmatmul.f32.gmra.mxu0 %v1256
    %v1275 = vpop.f32.mrf.mxu0
    %v1276 = vadd.f32 0.0, %v1275
    %1277 = vdwg.mxu0
    %v1278 = vadd.f32 %v1254, %v1276
    %v1279 = vxor.u32 %v1278, 2147483648
    %v1280 = vmul.f32 %v1279, 1.442695
    %v1281 = vpow.pop %v1280
    %v1282 = vadd.f32 %v1281, 1.0
    %v1283 = vrcp.pop %v1282
    %v1284 = vmul.f32 %v1282, %v1283
    %v1285 = vsub.f32 1.0, %v1284
    %v1286 = vmul.f32 %v1283, %v1285
    %v1287 = vadd.f32 %v1283, %v1286
    %vm1288 = vweird.f32 %v1282
    %vm1289 = vweird.f32 %v1283
    %vm1290 = vmor %vm1288, %vm1289
    %v1291 = vsel %vm1290, %v1283, %v1287
    %v1292 = vand.u32 2147483647, %v1282
    %vm1293 = vcmp.eq.f32.partialorder %v1292, 8.507059e+37
    %v1294 = vand.u32 %v1282, 2147483648
    %v1295 = vor.u32 1.1754944e-38, %v1294
    %v1296 = vsel %vm1293, %v1295, %v1291
    %v1297 = vmul.f32 1.0, %v1296
    %s1298 = scalar_lea.vmem [#allocation4], 28
    %v1299 = vld [vmem:[%s1298] sm:$0xf]
    %1300 = vmatpush.msra.mxu0 0.0
    %1301 = vmatpush.msra.mxu0 0.0
    %1302 = vmatpush.msra.mxu0 0.0
    %1303 = vmatpush.msra.mxu0 0.0
    %1304 = vmatpush.msra.mxu0 0.0
    %1305 = vmatpush.msra.mxu0 0.0
    %1306 = vmatpush.msra.mxu0 0.0
    %1307 = vmatpush.msra.mxu0 0.0
    %1308 = vmatpush.msra.mxu0 0.0
    %1309 = vmatpush.msra.mxu0 0.0
    %1310 = vmatpush.msra.mxu0 0.0
    %1311 = vmatpush.msra.mxu0 0.0
    %1312 = vmatpush.msra.mxu0 %v357
    %1313 = vmatpush.msra.mxu0 %v356
    %1314 = vmatpush.msra.mxu0 %v355
    %1315 = vmatpush.msra.mxu0 %v354
    %1316 = vmatmul.f32.gmra.mxu0 %v1256
    %v1317 = vpop.f32.mrf.mxu0
    %v1318 = vadd.f32 0.0, %v1317
    %1319 = vdwg.mxu0
    %v1320 = vadd.f32 %v1299, %v1318
    %v1321 = vxor.u32 %v1320, 2147483648
    %v1322 = vmul.f32 %v1321, 1.442695
    %v1323 = vpow.pop %v1322
    %v1324 = vadd.f32 %v1323, 1.0
    %v1325 = vrcp.pop %v1324
    %v1326 = vmul.f32 %v1324, %v1325
    %v1327 = vsub.f32 1.0, %v1326
    %v1328 = vmul.f32 %v1325, %v1327
    %v1329 = vadd.f32 %v1325, %v1328
    %vm1330 = vweird.f32 %v1324
    %vm1331 = vweird.f32 %v1325
    %vm1332 = vmor %vm1330, %vm1331
    %v1333 = vsel %vm1332, %v1325, %v1329
    %v1334 = vand.u32 2147483647, %v1324
    %vm1335 = vcmp.eq.f32.partialorder %v1334, 8.507059e+37
    %v1336 = vand.u32 %v1324, 2147483648
    %v1337 = vor.u32 1.1754944e-38, %v1336
    %v1338 = vsel %vm1335, %v1337, %v1333
    %v1339 = vmul.f32 1.0, %v1338
    %s1340 = scalar_lea.vmem [#allocation5], 28
    %v1341 = vld [vmem:[%s1340] sm:$0xf]
    %1342 = vmatpush.msra.mxu0 0.0
    %1343 = vmatpush.msra.mxu0 0.0
    %1344 = vmatpush.msra.mxu0 0.0
    %1345 = vmatpush.msra.mxu0 0.0
    %1346 = vmatpush.msra.mxu0 0.0
    %1347 = vmatpush.msra.mxu0 0.0
    %1348 = vmatpush.msra.mxu0 0.0
    %1349 = vmatpush.msra.mxu0 0.0
    %1350 = vmatpush.msra.mxu0 0.0
    %1351 = vmatpush.msra.mxu0 0.0
    %1352 = vmatpush.msra.mxu0 0.0
    %1353 = vmatpush.msra.mxu0 0.0
    %1354 = vmatpush.msra.mxu0 %v362
    %1355 = vmatpush.msra.mxu0 %v361
    %1356 = vmatpush.msra.mxu0 %v360
    %1357 = vmatpush.msra.mxu0 %v359
    %1358 = vmatmul.f32.gmra.mxu0 %v1256
    %v1359 = vpop.f32.mrf.mxu0
    %v1360 = vadd.f32 %v459, %v1359
    %1361 = vdwg.mxu0
    %v1362 = vmul.f32 %v1297, %v1360
    %v1363 = vadd.f32 %v1341, %v1362
    %v1364 = vtanh.pop %v1363
    %v1365 = vsub.f32 1.0, %v1339
    %v1366 = vmul.f32 %v1365, %v1364
    %v1367 = vmul.f32 %v1339, %v1252
    %v1368 = vadd.f32 %v1366, %v1367
    %s1369 = scalar_lea.vmem [#allocation11], 28
    %1370 = vst.msk [vmem:[%s1369] sm:$0xf] %vm168, %v1368
    %1371 = vst.msk [vmem:[#allocation2] sm:$0xf] %vm168, %v1368
    // Predicated region
    $region50: #{tpu_custom_call.1} parent=1 // pred_check
      %p1372 = pneg %p68
    $region51: #{tpu_custom_call.1} parent=1 // pred_check_branch
      %1374 = sbr.rel (%p1372) target = $region53
    $region52: #{tpu_custom_call.1} parent=1 // pred_region
      %1375 = vst.msk [vmem:[#allocation12] sm:$0xf] %vm168, %v1368
    $region53: #{tpu_custom_call.1} parent=1 // pred_fallthru
      _
    // Predicated region
    $region54: #{tpu_custom_call.1} parent=1 // pred_check
      _
    $region55: #{tpu_custom_call.1} parent=1 // pred_check_branch
      %1377 = sbr.rel (0) target = $region57
    $region56: #{tpu_custom_call.1} parent=1 // pred_region
      %1379 = vsyncadd [#allocation8], 0
      %s1380 = sshll.u32 [#allocation11], 4
      %s1381 = int_to_ptr.vmem [resolvable:$true] %s1380
      %s1382 = sshll.u32 %s9, 4
      %s1383 = int_to_ptr.hbm [resolvable:$true] %s1382
      %1388 = dma.vmem_to_hbm [thread:$0]  %s1381, 512, %s1383, [#allocation8], 64, 64, 4
    $region57: #{tpu_custom_call.1} parent=1 // pred_fallthru
      _
    // Predicated region
    $region58: #{tpu_custom_call.1} parent=1 // pred_check
      _
    $region59: #{tpu_custom_call.1} parent=1 // pred_check_branch
      %1390 = sbr.rel (0) target = $region61
    $region60: #{tpu_custom_call.1} parent=1 // pred_region
      %1392 = vsyncadd [#allocation13], 0
      %s1394 = sshll.u32 [#allocation12], 4
      %s1395 = int_to_ptr.vmem [resolvable:$true] %s1394
      %s1396 = sshll.u32 %s10, 4
      %s1397 = int_to_ptr.hbm [resolvable:$true] %s1396
      %1399 = dma.vmem_to_hbm [thread:$0]  %s1395, 64, %s1397, [#allocation13]
    $region61: #{tpu_custom_call.1} parent=1 // pred_fallthru
      _
    // Predicated region
    $region62: #{tpu_custom_call.1} parent=1 // pred_check
      _
    $region63: #{tpu_custom_call.1} parent=1 // pred_check_branch
      %1401 = sbr.rel (0) target = $region65
    $region64: #{tpu_custom_call.1} parent=1 // pred_region
      %1403 = dma.done [#allocation8], 512
    $region65: #{tpu_custom_call.1} parent=1 // pred_fallthru
      _
    // Predicated region
    $region66: #{tpu_custom_call.1} parent=1 // pred_check
      _
    $region67: #{tpu_custom_call.1} parent=1 // pred_check_branch
      %1405 = sbr.rel (0) target = $region69
    $region68: #{tpu_custom_call.1} parent=1 // pred_region
      %1407 = dma.done [#allocation13], 64
    $region69: #{tpu_custom_call.1} parent=1 // pred_fallthru
      _
    %1408 = vsyncpa [#allocation7], 1
    %1409 = vsyncpa [#allocation10], 1
    %1410 = vsyncpa [#allocation8], 1
    %1411 = vsyncpa [#allocation13], 1

</llo_original>
